<compile_context>
chip_gen: v6e
topology: v6e:2x2x1
jax: 0.10.0
libtpu: 0.0.40
codegen_flags: <defaults>
</compile_context>

<pallas_src>
import functools
import math

import jax
import jax.numpy as jnp
from jax.experimental import pallas as pl
from jax.experimental.pallas import tpu as pltpu


# -----------------------------------------------------------------------------
# Layout helpers
# -----------------------------------------------------------------------------
_LANE = 128                              # TPU lane width
_SUB = 16                                # sublane multiple (bf16 tile is (16, 128))
_K1_IN_BLOCK_BYTES = 4 * 1024 * 1024     # per-input block budget, band-magnitude kernel
_K2_IN_BLOCK_BYTES = 2 * 1024 * 1024     # per-input-stream block budget, BCE kernel
_VMEM_LIMIT_BYTES = 32 * 1024 * 1024     # explicit scoped-VMEM limit (safe v5e..v7x)


def _round_up(x, m):
    return ((x + m - 1) // m) * m


def _pick_row_tile(rows, max_rows, mult=_SUB):
    """Largest TR <= max_rows with TR % mult == 0 and TR dividing rows.

    `rows` is a multiple of `mult` by construction (spatial axis padded to a
    multiple of mult*LANE), so the TR == mult fallback always divides it and
    the stated VMEM budget is always honoured (no full-extent fallback)."""
    tr = min(rows, max(mult, (max_rows // mult) * mult))
    tr -= tr % mult
    while tr > mult and rows % tr != 0:
        tr -= mult
    return max(tr, mult)


# -----------------------------------------------------------------------------
# Complex steerable pyramid (Simoncelli-style raised-cosine frequency filters).
# TODO(synk): FFTs (fft2/ifft2/rfft2/irfft2) have no Pallas equivalent and
# remain plain JAX.  Filters are re-derived deterministically here (the
# original ComplexSteerablePyramid class is external).
# -----------------------------------------------------------------------------
def _polar_grid(h, w):
    fy = jnp.fft.fftfreq(h) * 2.0 * jnp.pi
    fx = jnp.fft.fftfreq(w) * 2.0 * jnp.pi
    FY, FX = jnp.meshgrid(fy, fx, indexing="ij")
    r = jnp.sqrt(FX * FX + FY * FY)
    th = jnp.arctan2(FY, FX)
    return r.astype(jnp.float32), th.astype(jnp.float32)


def _radial_masks(r):
    # raised-cosine (log-frequency) transition between r = pi/2 and r = pi
    t = jnp.clip(jnp.log2(jnp.maximum(r, 1e-12) / jnp.pi), -1.0, 0.0)
    lo = jnp.cos(0.5 * jnp.pi * (t + 1.0))
    hi = jnp.sin(0.5 * jnp.pi * (t + 1.0))
    return lo, hi


def _angular_mask(th, k, K):
    order = K - 1
    const = (2.0 ** order) * math.factorial(order) / math.sqrt(
        K * math.factorial(2 * order))
    dt = jnp.mod(th - jnp.pi * k / K + jnp.pi, 2.0 * jnp.pi) - jnp.pi
    half = (jnp.abs(dt) <= 0.5 * jnp.pi).astype(jnp.float32)
    # half-plane mask * 2 -> analytic (complex) bands
    return 2.0 * const * (jnp.cos(dt) ** order) * half


def _freq_downsample(fd):
    h, w = fd.shape[-2:]
    fs = jnp.fft.fftshift(fd, axes=(-2, -1))
    fs = fs[..., h // 4: h // 4 + h // 2, w // 4: w // 4 + w // 2]
    return jnp.fft.ifftshift(fs, axes=(-2, -1)) / 4.0


def steerable_pyramid_bands(img, N, K):
    """img: (B, C, H, W) f32 -> list of N oriented-band stacks; level i has
    shape (B, C, K, H/2^i, W/2^i) complex64.  The (unused) highpass/lowpass
    residuals of the full pyramid are skipped (they do not enter the loss)."""
    f = jnp.fft.fft2(img)
    H, W = img.shape[-2:]
    r, _ = _polar_grid(H, W)
    lo0, _hi0 = _radial_masks(r / 2.0)
    lodft = f * lo0
    levels = []
    for _ in range(N):
        h, w = lodft.shape[-2:]
        r, th = _polar_grid(h, w)
        lo, hi = _radial_masks(r)
        bands = []
        for k in range(K):
            bands.append(jnp.fft.ifft2(lodft * (hi * _angular_mask(th, k, K))))
        levels.append(jnp.stack(bands, axis=2))
        lodft = _freq_downsample(lodft * lo)
    return levels


def fft_upsample_2(image):
    """Port of SPW_loss.fft_upsample_2 (rfft2 zero-pad -> irfft2 -> abs)."""
    B, C, H, W = image.shape
    f = jnp.fft.rfft2(image)
    FW = f.shape[-1]
    newf = jnp.zeros((B, C, 2 * H, W + 1), dtype=jnp.complex64)
    newf = newf.at[:, :, : H // 2, :FW].set(f[:, :, : H // 2, :])
    newf = newf.at[:, :, 2 * H - H // 2:, :FW].set(f[:, :, H - H // 2:, :])
    return jnp.abs(jnp.fft.irfft2(newf))


def fft_upsample_n(image, scale):
    for _ in range(scale):
        image = fft_upsample_2(image)
    return image


# -----------------------------------------------------------------------------
# Pallas kernel 1: per-level orientation-magnitude sum
#   out[g] = sum over the 2K (mask-K + pred-K) bands of sqrt(re^2 + im^2)
# Input is ONE bf16 stream of shape (G, 4K, R, 128): for each (b, c) group the
# 4K leading planes are (mask/pred) x (band k) x (re, im), produced by a single
# fused packing pass from the complex64 pyramid output.  Grid (G, row tiles),
# both axes "parallel" (megacore shardable).  Pure VPU/EUP; memory bound.
# -----------------------------------------------------------------------------
def _band_mag_kernel(x_ref, o_ref, *, n_bands):
    acc = jnp.zeros(o_ref.shape[1:], jnp.float32)       # (TR, LANE)
    for j in range(n_bands):                             # static unroll (2K terms)
        re = x_ref[0, 2 * j].astype(jnp.float32)
        im = x_ref[0, 2 * j + 1].astype(jnp.float32)
        acc = acc + jnp.sqrt(re * re + im * im)
    o_ref[0] = acc


def band_orientation_magnitude_sum(band):
    """band: (B, 2C, K, h, w) complex64 with channel axis interleaved as
    [mask_c0, pred_c0, mask_c1, pred_c1, ...].
    Returns (B, C, h, w) f32 = sum_k |mask band| + sum_k |pred band|."""
    B, C2, K, h, w = band.shape
    C = C2 // 2
    G = B * C
    n_bands = 2 * K                       # mask-K + pred-K bands per (b, c)
    planes = 2 * n_bands                  # separate re / im planes
    S = h * w
    Sp = _round_up(S, _SUB * _LANE)       # lane-dense + exact row tiling
    R = Sp // _LANE
    TR = _pick_row_tile(R, _K1_IN_BLOCK_BYTES // (planes * _LANE * 2))
    n_s = R // TR

    # Single fused extraction: read complex64 once, write bf16 re/im planes
    # once (half the bytes of an f32 extraction).  bf16 is plenty for a loss
    # weight map (<=0.4% relative error on |z|).
    ri = jnp.stack([jnp.real(band), jnp.imag(band)], axis=3)     # (B,2C,K,2,h,w)
    ri = ri.astype(jnp.bfloat16).reshape(G, planes, S)           # row-major: free
    if Sp != S:                                                  # tiny levels only
        ri = jnp.pad(ri, ((0, 0), (0, 0), (0, Sp - S)))          # zero pad -> |.|=0
    ri = ri.reshape(G, planes, R, _LANE)

    out = pl.pallas_call(
        functools.partial(_band_mag_kernel, n_bands=n_bands),
        out_shape=jax.ShapeDtypeStruct((G, R, _LANE), jnp.float32),
        grid=(G, n_s),
        in_specs=[pl.BlockSpec((1, planes, TR, _LANE), lambda g, s: (g, 0, s, 0))],
        out_specs=pl.BlockSpec((1, TR, _LANE), lambda g, s: (g, s, 0)),
        compiler_params=pltpu.CompilerParams(
            dimension_semantics=("parallel", "parallel"),
            vmem_limit_bytes=_VMEM_LIMIT_BYTES),
    )(ri)

    out = out.reshape(G, Sp)
    if Sp != S:
        out = out[:, :S]
    return out.reshape(B, C, h, w)


# -----------------------------------------------------------------------------
# Pallas kernel 2: weighted BCE partial sums
#   partial[b, half] = sum over its rows of
#       where(m > .5, (lamb*wmap + cw1) * log(p+eps),
#                     (lamb*wmap + cw0) * log(1-p+eps))
# (exact rewrite of (..)*m*log(p) + (..)*(1-m)*log(1-p) for binary masks; fewer
#  VALU ops — matters on v7x where this kernel is borderline VALU-bound).
# Grid (B, 2 halves, row tiles): first two axes "parallel" (so v7x's two
# TensorCores are busy even at B == 1), tile axis "arbitrary" with a
# block-shaped f32 VMEM accumulator; one sublane reduce on the last tile.
# Final -mean is a tiny XLA op on the (B, 2, 1, LANE) per-lane partials.
# Zero padding of the flattened spatial axis contributes only
# cw0*log(1+1e-7) ~ 1e-7 per pad element (< 1e-6 relative on the loss).
# -----------------------------------------------------------------------------
def _bce_partial_kernel(cw_ref, wmap_ref, mask_ref, pred_ref, o_ref, acc_ref, *, lamb):
    b = pl.program_id(0)
    t = pl.program_id(2)

    @pl.when(t == 0)
    def _init():
        acc_ref[...] = jnp.zeros_like(acc_ref)

    w = wmap_ref[0].astype(jnp.float32) * lamb      # lamb folded in-kernel
    m = mask_ref[0]
    p = pred_ref[0]
    cw0 = cw_ref[2 * b]                             # negative-class weight
    cw1 = cw_ref[2 * b + 1]                         # positive-class weight
    logp = jnp.log(p + 1e-7)                        # EUP
    log1mp = jnp.log(1.0 - p + 1e-7)                # EUP (same op order as torch ref)
    acc_ref[...] += jnp.where(m > 0.5, (w + cw1) * logp, (w + cw0) * log1mp)

    @pl.when(t == pl.num_programs(2) - 1)
    def _flush():
        o_ref[0, 0] = jnp.sum(acc_ref[...], axis=0, keepdims=True)


def weighted_bce(weight_map, mask, pred, class_weight, *, lamb):
    B, C, H, W = mask.shape
    S = C * H * W
    Sp = _round_up(S, 2 * _SUB * _LANE)   # 2 core-halves x (16,128) tiles
    R = Sp // _LANE
    Rh = R // 2                           # rows per half
    TR = _pick_row_tile(Rh, _K2_IN_BLOCK_BYTES // (_LANE * 4))
    n_h = Rh // TR

    def prep(x, dtype):
        x = x.astype(dtype).reshape(B, S)
        if Sp != S:
            x = jnp.pad(x, ((0, 0), (0, Sp - S)))
        return x.reshape(B, R, _LANE)

    # weight_map as bf16 (cast fuses into its producer); mask/pred stay f32
    # (a standalone bf16 cast of them would add more HBM than it saves).
    wmap3 = prep(weight_map, jnp.bfloat16)
    mask3 = prep(mask, jnp.float32)
    pred3 = prep(pred, jnp.float32)
    cw = class_weight.astype(jnp.float32).reshape(B * 2)    # 1-D SMEM (no 2-D pad)

    partial = pl.pallas_call(
        functools.partial(_bce_partial_kernel, lamb=float(lamb)),
        out_shape=jax.ShapeDtypeStruct((B, 2, 1, _LANE), jnp.float32),
        grid=(B, 2, n_h),
        in_specs=[
            pl.BlockSpec(memory_space=pltpu.MemorySpace.SMEM),             # cw (2B,)
            pl.BlockSpec((1, TR, _LANE), lambda b, c, t: (b, c * n_h + t, 0)),  # wmap
            pl.BlockSpec((1, TR, _LANE), lambda b, c, t: (b, c * n_h + t, 0)),  # mask
            pl.BlockSpec((1, TR, _LANE), lambda b, c, t: (b, c * n_h + t, 0)),  # pred
        ],
        out_specs=pl.BlockSpec((1, 1, 1, _LANE), lambda b, c, t: (b, c, 0, 0)),
        scratch_shapes=[pltpu.VMEM((TR, _LANE), jnp.float32)],
        compiler_params=pltpu.CompilerParams(
            dimension_semantics=("parallel", "parallel", "arbitrary"),
            vmem_limit_bytes=_VMEM_LIMIT_BYTES),
    )(cw, wmap3, mask3, pred3)

    total = jnp.sum(partial)
    return -total / float(B * C * H * W)


# -----------------------------------------------------------------------------
# SPW_loss forward (base_loss='bce')
# -----------------------------------------------------------------------------
def spw_loss(mask, pred, w_map, class_weight, *, spN=4, spK=4, beta=0.9,
             lamb=10.0):
    del w_map  # unused for base_loss='bce', kept for signature parity
    B, C, H, W = mask.shape
    # Interleave mask/pred along the channel axis -> a single (batched) pyramid
    # for both; per-channel FFT filtering is identical to separate pyramids,
    # and the per-(b, c) 2K band grouping becomes a free reshape.
    both = jnp.stack([mask, pred], axis=2).reshape(B, 2 * C, H, W).astype(jnp.float32)
    levels = steerable_pyramid_bands(both, spN, spK)
    res = jnp.zeros((B, C, H, W), jnp.float32)
    for i in range(spN):
        feat = band_orientation_magnitude_sum(levels[i])
        res = res + (beta ** i) * fft_upsample_n(feat, i)
    # lamb is folded into the BCE kernel (pallas_call is opaque to XLA fusion).
    weight_map = jax.lax.stop_gradient(res)     # mirrors torch.no_grad()
    return weighted_bce(weight_map, mask, pred, class_weight, lamb=lamb)


if __name__ == "__main__":
    key = jax.random.PRNGKey(0)
    k1, k2, k3 = jax.random.split(key, 3)
    B, C, H, W = 2, 1, 16, 16
    mask = (jax.random.uniform(k1, (B, C, H, W)) > 0.5).astype(jnp.float32)
    pred = jax.nn.sigmoid(jax.random.normal(k2, (B, C, H, W), jnp.float32))
    class_weight = jax.random.uniform(k3, (B, 2, 1, 1), jnp.float32,
                                      minval=0.5, maxval=1.5)
    w_map = jnp.ones((B, C, H, W), jnp.float32)  # unused by the 'bce' branch

    loss = jax.jit(spw_loss)(mask, pred, w_map, class_weight)
    jax.block_until_ready(loss)
    print("KERNEL_OK")
</pallas_src>

<mosaic_0001>
module attributes {stable_mosaic.version = 11 : i64} {
  func.func @_band_mag_kernel(%arg0: i32, %arg1: i32, %arg2: memref<1x16x16x128xbf16, #tpu.memory_space<vmem>>, %arg3: memref<1x16x128xf32, #tpu.memory_space<vmem>>) attributes {dimension_semantics = [#tpu.dimension_semantics<parallel>, #tpu.dimension_semantics<parallel>], iteration_bounds = array<i64: 2, 1>, scalar_prefetch = 0 : i64, scratch_operands = 0 : i64, tpu.core_type = #tpu.core_type<tc>, window_params = [{transform_indices = @transform_0, window_bounds = array<i64: 1, 16, 16, 128>}, {transform_indices = @transform_1, window_bounds = array<i64: 1, 16, 128>}]} {
    %cst = arith.constant 0.000000e+00 : f32
    %0 = vector.broadcast %cst : f32 to vector<16x128xf32>
    %c0 = arith.constant 0 : index
    %c0_0 = arith.constant 0 : index
    %c0_1 = arith.constant 0 : index
    %c0_2 = arith.constant 0 : index
    %1 = vector.load %arg2[%c0, %c0_0, %c0_1, %c0_2] : memref<1x16x16x128xbf16, #tpu.memory_space<vmem>>, vector<1x1x16x128xbf16>
    %2 = vector.shape_cast %1 : vector<1x1x16x128xbf16> to vector<16x128xbf16>
    %3 = arith.extf %2 : vector<16x128xbf16> to vector<16x128xf32>
    %c0_3 = arith.constant 0 : index
    %c1 = arith.constant 1 : index
    %c0_4 = arith.constant 0 : index
    %c0_5 = arith.constant 0 : index
    %4 = vector.load %arg2[%c0_3, %c1, %c0_4, %c0_5] : memref<1x16x16x128xbf16, #tpu.memory_space<vmem>>, vector<1x1x16x128xbf16>
    %5 = vector.shape_cast %4 : vector<1x1x16x128xbf16> to vector<16x128xbf16>
    %6 = arith.extf %5 : vector<16x128xbf16> to vector<16x128xf32>
    %7 = arith.mulf %3, %3 : vector<16x128xf32>
    %8 = arith.mulf %6, %6 : vector<16x128xf32>
    %9 = arith.addf %7, %8 : vector<16x128xf32>
    %10 = math.sqrt %9 : vector<16x128xf32>
    %11 = arith.addf %0, %10 : vector<16x128xf32>
    %c0_6 = arith.constant 0 : index
    %c2 = arith.constant 2 : index
    %c0_7 = arith.constant 0 : index
    %c0_8 = arith.constant 0 : index
    %12 = vector.load %arg2[%c0_6, %c2, %c0_7, %c0_8] : memref<1x16x16x128xbf16, #tpu.memory_space<vmem>>, vector<1x1x16x128xbf16>
    %13 = vector.shape_cast %12 : vector<1x1x16x128xbf16> to vector<16x128xbf16>
    %14 = arith.extf %13 : vector<16x128xbf16> to vector<16x128xf32>
    %c0_9 = arith.constant 0 : index
    %c3 = arith.constant 3 : index
    %c0_10 = arith.constant 0 : index
    %c0_11 = arith.constant 0 : index
    %15 = vector.load %arg2[%c0_9, %c3, %c0_10, %c0_11] : memref<1x16x16x128xbf16, #tpu.memory_space<vmem>>, vector<1x1x16x128xbf16>
    %16 = vector.shape_cast %15 : vector<1x1x16x128xbf16> to vector<16x128xbf16>
    %17 = arith.extf %16 : vector<16x128xbf16> to vector<16x128xf32>
    %18 = arith.mulf %14, %14 : vector<16x128xf32>
    %19 = arith.mulf %17, %17 : vector<16x128xf32>
    %20 = arith.addf %18, %19 : vector<16x128xf32>
    %21 = math.sqrt %20 : vector<16x128xf32>
    %22 = arith.addf %11, %21 : vector<16x128xf32>
    %c0_12 = arith.constant 0 : index
    %c4 = arith.constant 4 : index
    %c0_13 = arith.constant 0 : index
    %c0_14 = arith.constant 0 : index
    %23 = vector.load %arg2[%c0_12, %c4, %c0_13, %c0_14] : memref<1x16x16x128xbf16, #tpu.memory_space<vmem>>, vector<1x1x16x128xbf16>
    %24 = vector.shape_cast %23 : vector<1x1x16x128xbf16> to vector<16x128xbf16>
    %25 = arith.extf %24 : vector<16x128xbf16> to vector<16x128xf32>
    %c0_15 = arith.constant 0 : index
    %c5 = arith.constant 5 : index
    %c0_16 = arith.constant 0 : index
    %c0_17 = arith.constant 0 : index
    %26 = vector.load %arg2[%c0_15, %c5, %c0_16, %c0_17] : memref<1x16x16x128xbf16, #tpu.memory_space<vmem>>, vector<1x1x16x128xbf16>
    %27 = vector.shape_cast %26 : vector<1x1x16x128xbf16> to vector<16x128xbf16>
    %28 = arith.extf %27 : vector<16x128xbf16> to vector<16x128xf32>
    %29 = arith.mulf %25, %25 : vector<16x128xf32>
    %30 = arith.mulf %28, %28 : vector<16x128xf32>
    %31 = arith.addf %29, %30 : vector<16x128xf32>
    %32 = math.sqrt %31 : vector<16x128xf32>
    %33 = arith.addf %22, %32 : vector<16x128xf32>
    %c0_18 = arith.constant 0 : index
    %c6 = arith.constant 6 : index
    %c0_19 = arith.constant 0 : index
    %c0_20 = arith.constant 0 : index
    %34 = vector.load %arg2[%c0_18, %c6, %c0_19, %c0_20] : memref<1x16x16x128xbf16, #tpu.memory_space<vmem>>, vector<1x1x16x128xbf16>
    %35 = vector.shape_cast %34 : vector<1x1x16x128xbf16> to vector<16x128xbf16>
    %36 = arith.extf %35 : vector<16x128xbf16> to vector<16x128xf32>
    %c0_21 = arith.constant 0 : index
    %c7 = arith.constant 7 : index
    %c0_22 = arith.constant 0 : index
    %c0_23 = arith.constant 0 : index
    %37 = vector.load %arg2[%c0_21, %c7, %c0_22, %c0_23] : memref<1x16x16x128xbf16, #tpu.memory_space<vmem>>, vector<1x1x16x128xbf16>
    %38 = vector.shape_cast %37 : vector<1x1x16x128xbf16> to vector<16x128xbf16>
    %39 = arith.extf %38 : vector<16x128xbf16> to vector<16x128xf32>
    %40 = arith.mulf %36, %36 : vector<16x128xf32>
    %41 = arith.mulf %39, %39 : vector<16x128xf32>
    %42 = arith.addf %40, %41 : vector<16x128xf32>
    %43 = math.sqrt %42 : vector<16x128xf32>
    %44 = arith.addf %33, %43 : vector<16x128xf32>
    %c0_24 = arith.constant 0 : index
    %c8 = arith.constant 8 : index
    %c0_25 = arith.constant 0 : index
    %c0_26 = arith.constant 0 : index
    %45 = vector.load %arg2[%c0_24, %c8, %c0_25, %c0_26] : memref<1x16x16x128xbf16, #tpu.memory_space<vmem>>, vector<1x1x16x128xbf16>
    %46 = vector.shape_cast %45 : vector<1x1x16x128xbf16> to vector<16x128xbf16>
    %47 = arith.extf %46 : vector<16x128xbf16> to vector<16x128xf32>
    %c0_27 = arith.constant 0 : index
    %c9 = arith.constant 9 : index
    %c0_28 = arith.constant 0 : index
    %c0_29 = arith.constant 0 : index
    %48 = vector.load %arg2[%c0_27, %c9, %c0_28, %c0_29] : memref<1x16x16x128xbf16, #tpu.memory_space<vmem>>, vector<1x1x16x128xbf16>
    %49 = vector.shape_cast %48 : vector<1x1x16x128xbf16> to vector<16x128xbf16>
    %50 = arith.extf %49 : vector<16x128xbf16> to vector<16x128xf32>
    %51 = arith.mulf %47, %47 : vector<16x128xf32>
    %52 = arith.mulf %50, %50 : vector<16x128xf32>
    %53 = arith.addf %51, %52 : vector<16x128xf32>
    %54 = math.sqrt %53 : vector<16x128xf32>
    %55 = arith.addf %44, %54 : vector<16x128xf32>
    %c0_30 = arith.constant 0 : index
    %c10 = arith.constant 10 : index
    %c0_31 = arith.constant 0 : index
    %c0_32 = arith.constant 0 : index
    %56 = vector.load %arg2[%c0_30, %c10, %c0_31, %c0_32] : memref<1x16x16x128xbf16, #tpu.memory_space<vmem>>, vector<1x1x16x128xbf16>
    %57 = vector.shape_cast %56 : vector<1x1x16x128xbf16> to vector<16x128xbf16>
    %58 = arith.extf %57 : vector<16x128xbf16> to vector<16x128xf32>
    %c0_33 = arith.constant 0 : index
    %c11 = arith.constant 11 : index
    %c0_34 = arith.constant 0 : index
    %c0_35 = arith.constant 0 : index
    %59 = vector.load %arg2[%c0_33, %c11, %c0_34, %c0_35] : memref<1x16x16x128xbf16, #tpu.memory_space<vmem>>, vector<1x1x16x128xbf16>
    %60 = vector.shape_cast %59 : vector<1x1x16x128xbf16> to vector<16x128xbf16>
    %61 = arith.extf %60 : vector<16x128xbf16> to vector<16x128xf32>
    %62 = arith.mulf %58, %58 : vector<16x128xf32>
    %63 = arith.mulf %61, %61 : vector<16x128xf32>
    %64 = arith.addf %62, %63 : vector<16x128xf32>
    %65 = math.sqrt %64 : vector<16x128xf32>
    %66 = arith.addf %55, %65 : vector<16x128xf32>
    %c0_36 = arith.constant 0 : index
    %c12 = arith.constant 12 : index
    %c0_37 = arith.constant 0 : index
    %c0_38 = arith.constant 0 : index
    %67 = vector.load %arg2[%c0_36, %c12, %c0_37, %c0_38] : memref<1x16x16x128xbf16, #tpu.memory_space<vmem>>, vector<1x1x16x128xbf16>
    %68 = vector.shape_cast %67 : vector<1x1x16x128xbf16> to vector<16x128xbf16>
    %69 = arith.extf %68 : vector<16x128xbf16> to vector<16x128xf32>
    %c0_39 = arith.constant 0 : index
    %c13 = arith.constant 13 : index
    %c0_40 = arith.constant 0 : index
    %c0_41 = arith.constant 0 : index
    %70 = vector.load %arg2[%c0_39, %c13, %c0_40, %c0_41] : memref<1x16x16x128xbf16, #tpu.memory_space<vmem>>, vector<1x1x16x128xbf16>
    %71 = vector.shape_cast %70 : vector<1x1x16x128xbf16> to vector<16x128xbf16>
    %72 = arith.extf %71 : vector<16x128xbf16> to vector<16x128xf32>
    %73 = arith.mulf %69, %69 : vector<16x128xf32>
    %74 = arith.mulf %72, %72 : vector<16x128xf32>
    %75 = arith.addf %73, %74 : vector<16x128xf32>
    %76 = math.sqrt %75 : vector<16x128xf32>
    %77 = arith.addf %66, %76 : vector<16x128xf32>
    %c0_42 = arith.constant 0 : index
    %c14 = arith.constant 14 : index
    %c0_43 = arith.constant 0 : index
    %c0_44 = arith.constant 0 : index
    %78 = vector.load %arg2[%c0_42, %c14, %c0_43, %c0_44] : memref<1x16x16x128xbf16, #tpu.memory_space<vmem>>, vector<1x1x16x128xbf16>
    %79 = vector.shape_cast %78 : vector<1x1x16x128xbf16> to vector<16x128xbf16>
    %80 = arith.extf %79 : vector<16x128xbf16> to vector<16x128xf32>
    %c0_45 = arith.constant 0 : index
    %c15 = arith.constant 15 : index
    %c0_46 = arith.constant 0 : index
    %c0_47 = arith.constant 0 : index
    %81 = vector.load %arg2[%c0_45, %c15, %c0_46, %c0_47] : memref<1x16x16x128xbf16, #tpu.memory_space<vmem>>, vector<1x1x16x128xbf16>
    %82 = vector.shape_cast %81 : vector<1x1x16x128xbf16> to vector<16x128xbf16>
    %83 = arith.extf %82 : vector<16x128xbf16> to vector<16x128xf32>
    %84 = arith.mulf %80, %80 : vector<16x128xf32>
    %85 = arith.mulf %83, %83 : vector<16x128xf32>
    %86 = arith.addf %84, %85 : vector<16x128xf32>
    %87 = math.sqrt %86 : vector<16x128xf32>
    %88 = arith.addf %77, %87 : vector<16x128xf32>
    %c0_48 = arith.constant 0 : index
    %c0_49 = arith.constant 0 : index
    %c0_50 = arith.constant 0 : index
    %89 = vector.load %arg3[%c0_48, %c0_49, %c0_50] : memref<1x16x128xf32, #tpu.memory_space<vmem>>, vector<1x16x128xf32>
    %90 = vector.shape_cast %89 : vector<1x16x128xf32> to vector<16x128xf32>
    %91 = vector.shape_cast %88 : vector<16x128xf32> to vector<1x16x128xf32>
    tpu.vector_store %arg3[%c0_48, %c0_49, %c0_50], %91 {strides = array<i32>} : memref<1x16x128xf32, #tpu.memory_space<vmem>>, vector<1x16x128xf32>,
    return
  }
  func.func @transform_0(%arg0: i32, %arg1: i32) -> (i32, i32, i32, i32) {
    %c0_i32 = arith.constant 0 : i32
    %c0_i32_0 = arith.constant 0 : i32
    %c0_i32_1 = arith.constant 0 : i32
    return %arg0, %c0_i32, %arg1, %c0_i32_0 : i32, i32, i32, i32
  }
  func.func @transform_1(%arg0: i32, %arg1: i32) -> (i32, i32, i32) {
    %c0_i32 = arith.constant 0 : i32
    %c0_i32_0 = arith.constant 0 : i32
    return %arg0, %arg1, %c0_i32 : i32, i32, i32
  }
}

module attributes {stable_mosaic.version = 11 : i64} {
  func.func @_bce_partial_kernel(%arg0: i32, %arg1: i32, %arg2: i32, %arg3: memref<4xf32, #tpu.memory_space<smem>>, %arg4: memref<1x16x128xbf16, #tpu.memory_space<vmem>>, %arg5: memref<1x16x128xf32, #tpu.memory_space<vmem>>, %arg6: memref<1x16x128xf32, #tpu.memory_space<vmem>>, %arg7: memref<1x1x1x128xf32, #tpu.memory_space<vmem>>, %arg8: memref<16x128xf32, #tpu.memory_space<vmem>>) attributes {dimension_semantics = [#tpu.dimension_semantics<parallel>, #tpu.dimension_semantics<parallel>, #tpu.dimension_semantics<arbitrary>], iteration_bounds = array<i64: 2, 2, 1>, scalar_prefetch = 0 : i64, scratch_operands = 1 : i64, tpu.core_type = #tpu.core_type<tc>, window_params = [{transform_indices = @transform_0, window_bounds = array<i64: 4>}, {transform_indices = @transform_1, window_bounds = array<i64: 1, 16, 128>}, {transform_indices = @transform_2, window_bounds = array<i64: 1, 16, 128>}, {transform_indices = @transform_3, window_bounds = array<i64: 1, 16, 128>}, {transform_indices = @transform_4, window_bounds = array<i64: 1, 1, 1, 128>}]} {
    %c0_i32 = arith.constant 0 : i32
    %0 = arith.cmpi eq, %arg2, %c0_i32 : i32
    %1 = arith.extui %0 : i1 to i32
    %c0_i32_0 = arith.constant 0 : i32
    %2 = arith.cmpi ne, %1, %c0_i32_0 : i32
    scf.if %2 {
      %cst_20 = arith.constant 0.000000e+00 : f32
      %42 = vector.broadcast %cst_20 : f32 to vector<16x128xf32>
      %c0_21 = arith.constant 0 : index
      %c0_22 = arith.constant 0 : index
      %43 = vector.load %arg8[%c0_21, %c0_22] : memref<16x128xf32, #tpu.memory_space<vmem>>, vector<16x128xf32>
      tpu.vector_store %arg8[%c0_21, %c0_22], %42 {strides = array<i32>} : memref<16x128xf32, #tpu.memory_space<vmem>>, vector<16x128xf32>,
    } else {
    }
    %c0 = arith.constant 0 : index
    %c0_1 = arith.constant 0 : index
    %c0_2 = arith.constant 0 : index
    %3 = vector.load %arg4[%c0, %c0_1, %c0_2] : memref<1x16x128xbf16, #tpu.memory_space<vmem>>, vector<1x16x128xbf16>
    %4 = vector.shape_cast %3 : vector<1x16x128xbf16> to vector<16x128xbf16>
    %5 = arith.extf %4 : vector<16x128xbf16> to vector<16x128xf32>
    %cst = arith.constant 1.000000e+01 : f32
    %6 = vector.broadcast %cst : f32 to vector<16x128xf32>
    %7 = arith.mulf %5, %6 : vector<16x128xf32>
    %c0_3 = arith.constant 0 : index
    %c0_4 = arith.constant 0 : index
    %c0_5 = arith.constant 0 : index
    %8 = vector.load %arg5[%c0_3, %c0_4, %c0_5] : memref<1x16x128xf32, #tpu.memory_space<vmem>>, vector<1x16x128xf32>
    %9 = vector.shape_cast %8 : vector<1x16x128xf32> to vector<16x128xf32>
    %c0_6 = arith.constant 0 : index
    %c0_7 = arith.constant 0 : index
    %c0_8 = arith.constant 0 : index
    %10 = vector.load %arg6[%c0_6, %c0_7, %c0_8] : memref<1x16x128xf32, #tpu.memory_space<vmem>>, vector<1x16x128xf32>
    %11 = vector.shape_cast %10 : vector<1x16x128xf32> to vector<16x128xf32>
    %c2_i32 = arith.constant 2 : i32
    %12 = arith.muli %c2_i32, %arg0 : i32
    %13 = arith.index_cast %12 : i32 to index
    %14 = memref.load %arg3[%13] : memref<4xf32, #tpu.memory_space<smem>>
    %c2_i32_9 = arith.constant 2 : i32
    %15 = arith.muli %c2_i32_9, %arg0 : i32
    %c1_i32 = arith.constant 1 : i32
    %16 = arith.addi %15, %c1_i32 : i32
    %17 = arith.index_cast %16 : i32 to index
    %18 = memref.load %arg3[%17] : memref<4xf32, #tpu.memory_space<smem>>
    %cst_10 = arith.constant 1.000000e-07 : f32
    %19 = vector.broadcast %cst_10 : f32 to vector<16x128xf32>
    %20 = arith.addf %11, %19 : vector<16x128xf32>
    %21 = math.log %20 : vector<16x128xf32>
    %cst_11 = arith.constant 1.000000e+00 : f32
    %22 = vector.broadcast %cst_11 : f32 to vector<16x128xf32>
    %23 = arith.subf %22, %11 : vector<16x128xf32>
    %cst_12 = arith.constant 1.000000e-07 : f32
    %24 = vector.broadcast %cst_12 : f32 to vector<16x128xf32>
    %25 = arith.addf %23, %24 : vector<16x128xf32>
    %26 = math.log %25 : vector<16x128xf32>
    %c0_13 = arith.constant 0 : index
    %c0_14 = arith.constant 0 : index
    %27 = vector.load %arg8[%c0_13, %c0_14] : memref<16x128xf32, #tpu.memory_space<vmem>>, vector<16x128xf32>
    %cst_15 = arith.constant 5.000000e-01 : f32
    %28 = vector.broadcast %cst_15 : f32 to vector<16x128xf32>
    %29 = arith.cmpf ogt, %9, %28 : vector<16x128xf32>
    %30 = vector.broadcast %18 : f32 to vector<16x128xf32>
    %31 = arith.addf %7, %30 : vector<16x128xf32>
    %32 = arith.mulf %31, %21 : vector<16x128xf32>
    %33 = vector.broadcast %14 : f32 to vector<16x128xf32>
    %34 = arith.addf %7, %33 : vector<16x128xf32>
    %35 = arith.mulf %34, %26 : vector<16x128xf32>
    %36 = arith.select %29, %32, %35 : vector<16x128xi1>, vector<16x128xf32>
    %37 = arith.addf %27, %36 : vector<16x128xf32>
    %c0_16 = arith.constant 0 : index
    %c0_17 = arith.constant 0 : index
    %38 = vector.load %arg8[%c0_16, %c0_17] : memref<16x128xf32, #tpu.memory_space<vmem>>, vector<16x128xf32>
    tpu.vector_store %arg8[%c0_16, %c0_17], %37 {strides = array<i32>} : memref<16x128xf32, #tpu.memory_space<vmem>>, vector<16x128xf32>,
    %c0_i32_18 = arith.constant 0 : i32
    %39 = arith.cmpi eq, %arg2, %c0_i32_18 : i32
    %40 = arith.extui %39 : i1 to i32
    %c0_i32_19 = arith.constant 0 : i32
    %41 = arith.cmpi ne, %40, %c0_i32_19 : i32
    scf.if %41 {
      %c0_20 = arith.constant 0 : index
      %c0_21 = arith.constant 0 : index
      %42 = vector.load %arg8[%c0_20, %c0_21] : memref<16x128xf32, #tpu.memory_space<vmem>>, vector<16x128xf32>
      %cst_22 = arith.constant dense<0.000000e+00> : vector<128xf32>
      %43 = vector.multi_reduction <add>, %42, %cst_22 [0] : vector<16x128xf32> to vector<128xf32>
      %44 = vector.shape_cast %43 : vector<128xf32> to vector<1x128xf32>
      %c0_23 = arith.constant 0 : index
      %c0_24 = arith.constant 0 : index
      %c0_25 = arith.constant 0 : index
      %c0_26 = arith.constant 0 : index
      %45 = vector.load %arg7[%c0_23, %c0_24, %c0_25, %c0_26] : memref<1x1x1x128xf32, #tpu.memory_space<vmem>>, vector<1x1x1x128xf32>
      %46 = vector.shape_cast %45 : vector<1x1x1x128xf32> to vector<1x128xf32>
      %47 = vector.shape_cast %44 : vector<1x128xf32> to vector<1x1x1x128xf32>
      tpu.vector_store %arg7[%c0_23, %c0_24, %c0_25, %c0_26], %47 {strides = array<i32>} : memref<1x1x1x128xf32, #tpu.memory_space<vmem>>, vector<1x1x1x128xf32>,
    } else {
    }
    return
  }
  func.func @transform_0(%arg0: i32, %arg1: i32, %arg2: i32) -> i32 {
    %c0_i32 = arith.constant 0 : i32
    %c0_i32_0 = arith.constant 0 : i32
    return %c0_i32 : i32
  }
  func.func @transform_1(%arg0: i32, %arg1: i32, %arg2: i32) -> (i32, i32, i32) {
    %c1_i32 = arith.constant 1 : i32
    %0 = arith.muli %arg1, %c1_i32 : i32
    %1 = arith.addi %0, %arg2 : i32
    %c0_i32 = arith.constant 0 : i32
    %c0_i32_0 = arith.constant 0 : i32
    return %arg0, %1, %c0_i32 : i32, i32, i32
  }
  func.func @transform_2(%arg0: i32, %arg1: i32, %arg2: i32) -> (i32, i32, i32) {
    %c1_i32 = arith.constant 1 : i32
    %0 = arith.muli %arg1, %c1_i32 : i32
    %1 = arith.addi %0, %arg2 : i32
    %c0_i32 = arith.constant 0 : i32
    %c0_i32_0 = arith.constant 0 : i32
    return %arg0, %1, %c0_i32 : i32, i32, i32
  }
  func.func @transform_3(%arg0: i32, %arg1: i32, %arg2: i32) -> (i32, i32, i32) {
    %c1_i32 = arith.constant 1 : i32
    %0 = arith.muli %arg1, %c1_i32 : i32
    %1 = arith.addi %0, %arg2 : i32
    %c0_i32 = arith.constant 0 : i32
    %c0_i32_0 = arith.constant 0 : i32
    return %arg0, %1, %c0_i32 : i32, i32, i32
  }
  func.func @transform_4(%arg0: i32, %arg1: i32, %arg2: i32) -> (i32, i32, i32, i32) {
    %c0_i32 = arith.constant 0 : i32
    %c0_i32_0 = arith.constant 0 : i32
    %c0_i32_1 = arith.constant 0 : i32
    return %arg0, %arg1, %c0_i32, %c0_i32_0 : i32, i32, i32, i32
  }
}

</mosaic_0001>

<llo_original>
// kernel: spw_loss.5
$region0: #{spw_loss.5}
  #allocation0 [shape = 'u32[]', space=smem, size = 0x4, offset = 0x4, fixed_abs, tag = 'smem constant byte address 0x4 - core index']
  #allocation1 [shape = 'u32[144,128]{1,0:T(1,128)}', space=vmem, size = 0x12000, scoped, tag = 'internal scratch']
  %s0 = inlined_call_operand.vmem [shape: bf16[2,16,16,128], index: 0, kind: input, shape index: {}]
  %s1 = inlined_call_operand.vmem [shape: f32[2,16,128], index: 1, kind: output, shape index: {}]
  %s2 = sld [smem:[#allocation0]]
  $region37: #{spw_loss.5} parent=0
    _
  %s4 = ssub.s32 1, %s2
  %s5 = scalar_select 0, %s4, %s2
  loop: start=0, step=1, limit=4
  $region2: #{spw_loss.5} parent=0 // loop_pre_header
    _
  $region3: #{spw_loss.5} parent=0 // loop_header
    %s7 = sphi 0, %s11
    %p8 = scmp.ge.s32.totalorder %s7, 4
    %s14 = sphi 0, %s26
    %s15 = sphi 0, %s22
    %s16 = sphi 0, %s14
    %s17 = sphi 0, %s15
    %s18 = sphi 0, %s16
    %s19 = sphi 0, %s17
    %s31 = sphi 0, %s33
    %s34 = sphi 0, %s31
    %s35 = sphi 0, %s34
    %s51 = sphi 0, %s35
    %s59 = sphi 0, %s61
    %s62 = sphi 0, %s59
    %s63 = sphi 0, %s62
    %s79 = sphi 0, %s63
  $region4: #{spw_loss.5} parent=0 // loop_header_branch
    %10 = sbr.rel (%p8) target = $region8
  $region5: #{spw_loss.5} parent=0 // loop_body
    %s12 = ssub.s32 %s7, 1
    %s13 = ssub.s32 %s7, 2
    %s20 = sadd.s32 1, %s15
    %p21 = scmp.ge.s32.totalorder %s20, 1
    %s22 = scalar_select %p21, 0, %s20
    %s23 = sadd.s32 1, %s14
    %s24 = scalar_select %p21, %s23, %s14
    %p25 = scmp.ge.s32.totalorder %s24, 2
    %s26 = scalar_select %p25, 0, %s24
    %s27 = ssub.s32 %s14, %s26
    %s28 = ssub.s32 %s15, %s22
    %s29 = sor.u32 %s27, %s28
    %p30 = scmp.eq.s32.totalorder %s29, 0
    %s32 = sadd.s32 %s31, 1
    %s33 = scalar_select %p30, %s31, %s32
    %p36 = pneg %p30
    %p37 = scmp.eq.s32.totalorder %s7, 1
    %p38 = por %p36, %p37
    %p39 = scmp.ne.s32.totalorder %s31, %s34
    %p40 = scmp.eq.s32.totalorder %s7, 0
    %p41 = por %p39, %p40
    %p42 = scmp.ne.s32.totalorder %s31, %s34
    %p43 = scmp.eq.s32.totalorder %s12, 1
    %p44 = por %p42, %p43
    %p45 = scmp.ne.s32.totalorder %s34, %s35
    %p46 = scmp.eq.s32.totalorder %s12, 0
    %p47 = por %p45, %p46
    %p48 = scmp.ne.s32.totalorder %s34, %s35
    %p49 = scmp.eq.s32.totalorder %s13, 1
    %p50 = por %p48, %p49
    %p52 = scmp.ne.s32.totalorder %s35, %s51
    %p53 = scmp.eq.s32.totalorder %s13, 0
    %p54 = por %p52, %p53
    %s55 = ssub.s32 %s14, %s26
    %s56 = ssub.s32 %s15, %s22
    %s57 = sor.u32 %s55, %s56
    %p58 = scmp.eq.s32.totalorder %s57, 0
    %s60 = sadd.s32 %s59, 1
    %s61 = scalar_select %p58, %s59, %s60
    %p64 = pneg %p58
    %p65 = scmp.eq.s32.totalorder %s7, 1
    %p66 = por %p64, %p65
    %p67 = scmp.ne.s32.totalorder %s59, %s62
    %p68 = scmp.eq.s32.totalorder %s7, 0
    %p69 = por %p67, %p68
    %p70 = scmp.ne.s32.totalorder %s59, %s62
    %p71 = scmp.eq.s32.totalorder %s12, 1
    %p72 = por %p70, %p71
    %p73 = scmp.ne.s32.totalorder %s62, %s63
    %p74 = scmp.eq.s32.totalorder %s12, 0
    %p75 = por %p73, %p74
    %p76 = scmp.ne.s32.totalorder %s62, %s63
    %p77 = scmp.eq.s32.totalorder %s13, 1
    %p78 = por %p76, %p77
    %p80 = scmp.ne.s32.totalorder %s63, %s79
    %p81 = scmp.eq.s32.totalorder %s13, 0
    %p82 = por %p80, %p81
    %p83 = scmp.le.s32.totalorder 1, %s7
    %p84 = scmp.lt.s32.totalorder %s7, 3
    %p85 = pnand %p83, %p84
    %p86 = pneg %p85
    // Predicated region
    $region9: #{spw_loss.5} parent=5 // pred_check
      _
    $region10: #{spw_loss.5} parent=5 // pred_check_branch
      %88 = sbr.rel (%p85) target = $region12
    $region11: #{spw_loss.5} parent=5 // pred_region
      %s89 = ssub.s32 %s7, 1
    $region12: #{spw_loss.5} parent=5 // pred_fallthru
      _
    %p90 = scmp.lt.s32.totalorder %s7, 2
    // Predicated region
    $region13: #{spw_loss.5} parent=5 // pred_check
      %p91 = pneg %p90
    $region14: #{spw_loss.5} parent=5 // pred_check_branch
      %93 = sbr.rel (%p91) target = $region16
    $region15: #{spw_loss.5} parent=5 // pred_region
      // Predicated region
      $region17: #{spw_loss.5} parent=15 // pred_check
        %p94 = pneg %p41
      $region18: #{spw_loss.5} parent=15 // pred_check_branch
        %96 = sbr.rel (%p94) target = $region20
      $region19: #{spw_loss.5} parent=15 // pred_region
        %s97 = smul.u32 2, %s15
        %p98 = scmp.lt.s32.totalorder %s14, 1
        %s99 = scalar_select %p98, %s14, 1
        %p100 = scmp.lt.s32.totalorder %s97, 1
        %s101 = scalar_select %p100, %s97, 1
        %s102 = smul.addr %s99, 32
        %s103 = sadd.s32 %s101, %s102
        %s104 = smul.addr %s103, 4
        %s105 = scalar_lea.vmem %s0, %s104
        %s106 = smul.u32 2, %s15
      $region20: #{spw_loss.5} parent=15 // pred_fallthru
        _
    $region16: #{spw_loss.5} parent=5 // pred_fallthru
      _
    %p107 = scmp.le.s32.totalorder 1, %s7
    %p108 = scmp.lt.s32.totalorder %s7, 3
    %p109 = pnand %p107, %p108
    %p110 = pneg %p109
    // Predicated region
    $region21: #{spw_loss.5} parent=5 // pred_check
      _
    $region22: #{spw_loss.5} parent=5 // pred_check_branch
      %112 = sbr.rel (%p109) target = $region24
    $region23: #{spw_loss.5} parent=5 // pred_region
      %s113 = ssub.s32 %s7, 1
      %s114 = smul.u32 2, %s17
      %p115 = scmp.lt.s32.totalorder %s16, 1
      %s116 = scalar_select %p115, %s16, 1
      %p117 = scmp.lt.s32.totalorder %s114, 1
      %s118 = scalar_select %p117, %s114, 1
      %s119 = smul.addr %s116, 32
      %s120 = sadd.s32 %s118, %s119
      %s121 = smul.addr %s120, 4
      %s122 = scalar_lea.vmem %s0, %s121
      %p123 = pneg %p47
      %p124 = pneg %p44
      %p125 = pneg %p75
      %p126 = pneg %p72
      %s127 = smul.u32 2, %s17
      %p128 = scmp.lt.s32.totalorder %s16, 1
      %s129 = scalar_select %p128, %s16, 1
      %p130 = scmp.lt.s32.totalorder %s127, 1
      %s131 = scalar_select %p130, %s127, 1
      %s132 = smul.addr %s129, 2
      %s133 = sadd.s32 %s131, %s132
      %s134 = smul.addr %s133, 8
      %s135 = scalar_lea.vmem %s1, %s134
      %s136 = smul.u32 2, %s17
      %p137 = scmp.lt.s32.totalorder %s16, 1
      %s138 = scalar_select %p137, %s16, 1
      %p139 = scmp.lt.s32.totalorder %s136, 1
      %s140 = scalar_select %p139, %s136, 1
      %s141 = smul.addr %s138, 32
      %s142 = sadd.s32 %s140, %s141
      %s143 = smul.addr %s142, 4
      %s144 = scalar_lea.vmem %s0, %s143
      %s145 = smul.u32 2, %s17
      %s146 = smul.u32 2, %s17
      %p147 = scmp.lt.s32.totalorder %s16, 1
      %s148 = scalar_select %p147, %s16, 1
      %p149 = scmp.lt.s32.totalorder %s146, 1
      %s150 = scalar_select %p149, %s146, 1
      %s151 = smul.addr %s148, 2
      %s152 = sadd.s32 %s150, %s151
      %s153 = smul.addr %s152, 8
      %s154 = scalar_lea.vmem %s1, %s153
      %s155 = smul.u32 2, %s17
      %v156 = vld [vmem:[%s144] sm:$0xf]
      %v157 = vld [vmem:[%s144 + $0x4] sm:$0xf]
      %v158 = vunpack.c.l.bf16 %v156
      %v159 = vunpack.c.l.bf16 %v157
      %s160 = scalar_lea.vmem %s144, 8
      %v161 = vld [vmem:[%s160] sm:$0xf]
      %v162 = vld [vmem:[%s160 + $0x4] sm:$0xf]
      %v163 = vunpack.c.l.bf16 %v161
      %v164 = vunpack.c.l.bf16 %v162
      %v165 = vmul.f32 %v158, %v158
      %v166 = vmul.f32 %v159, %v159
      %v167 = vmul.f32 %v163, %v163
      %v168 = vmul.f32 %v164, %v164
      %v169 = vadd.f32 %v165, %v167
      %v170 = vadd.f32 %v166, %v168
      %v171 = vrsqrt.pop %v169
      %v172 = vmul.f32 %v169, %v171
      %vm173 = vcmp.eq.f32.partialorder %v169, inf
      %v174 = vsel %vm173, %v169, %v172
      %vm175 = vcmp.eq.f32.partialorder %v169, 0.0
      %v176 = vand.u32 %v169, 2147483648
      %v177 = vsel %vm175, %v176, %v174
      %v178 = vrsqrt.pop %v170
      %v179 = vmul.f32 %v170, %v178
      %vm180 = vcmp.eq.f32.partialorder %v170, inf
      %v181 = vsel %vm180, %v170, %v179
      %vm182 = vcmp.eq.f32.partialorder %v170, 0.0
      %v183 = vand.u32 %v170, 2147483648
      %v184 = vsel %vm182, %v183, %v181
      %v185 = vadd.f32 %v177, 0.0
      %v186 = vadd.f32 %v184, 0.0
      %s187 = scalar_lea.vmem %s144, 16
      %v188 = vld [vmem:[%s187] sm:$0xf]
      %v189 = vld [vmem:[%s187 + $0x4] sm:$0xf]
      %v190 = vunpack.c.l.bf16 %v188
      %v191 = vunpack.c.l.bf16 %v189
      %s192 = scalar_lea.vmem %s144, 24
      %v193 = vld [vmem:[%s192] sm:$0xf]
      %v194 = vld [vmem:[%s192 + $0x4] sm:$0xf]
      %v195 = vunpack.c.l.bf16 %v193
      %v196 = vunpack.c.l.bf16 %v194
      %v197 = vmul.f32 %v190, %v190
      %v198 = vmul.f32 %v191, %v191
      %v199 = vmul.f32 %v195, %v195
      %v200 = vmul.f32 %v196, %v196
      %v201 = vadd.f32 %v197, %v199
      %v202 = vadd.f32 %v198, %v200
      %v203 = vrsqrt.pop %v201
      %v204 = vmul.f32 %v201, %v203
      %vm205 = vcmp.eq.f32.partialorder %v201, inf
      %v206 = vsel %vm205, %v201, %v204
      %vm207 = vcmp.eq.f32.partialorder %v201, 0.0
      %v208 = vand.u32 %v201, 2147483648
      %v209 = vsel %vm207, %v208, %v206
      %v210 = vrsqrt.pop %v202
      %v211 = vmul.f32 %v202, %v210
      %vm212 = vcmp.eq.f32.partialorder %v202, inf
      %v213 = vsel %vm212, %v202, %v211
      %vm214 = vcmp.eq.f32.partialorder %v202, 0.0
      %v215 = vand.u32 %v202, 2147483648
      %v216 = vsel %vm214, %v215, %v213
      %v217 = vadd.f32 %v185, %v209
      %v218 = vadd.f32 %v186, %v216
      %s219 = scalar_lea.vmem %s144, 32
      %v220 = vld [vmem:[%s219] sm:$0xf]
      %v221 = vld [vmem:[%s219 + $0x4] sm:$0xf]
      %v222 = vunpack.c.l.bf16 %v220
      %v223 = vunpack.c.l.bf16 %v221
      %s224 = scalar_lea.vmem %s144, 40
      %v225 = vld [vmem:[%s224] sm:$0xf]
      %v226 = vld [vmem:[%s224 + $0x4] sm:$0xf]
      %v227 = vunpack.c.l.bf16 %v225
      %v228 = vunpack.c.l.bf16 %v226
      %v229 = vmul.f32 %v222, %v222
      %v230 = vmul.f32 %v223, %v223
      %v231 = vmul.f32 %v227, %v227
      %v232 = vmul.f32 %v228, %v228
      %v233 = vadd.f32 %v229, %v231
      %v234 = vadd.f32 %v230, %v232
      %v235 = vrsqrt.pop %v233
      %v236 = vmul.f32 %v233, %v235
      %vm237 = vcmp.eq.f32.partialorder %v233, inf
      %v238 = vsel %vm237, %v233, %v236
      %vm239 = vcmp.eq.f32.partialorder %v233, 0.0
      %v240 = vand.u32 %v233, 2147483648
      %v241 = vsel %vm239, %v240, %v238
      %v242 = vrsqrt.pop %v234
      %v243 = vmul.f32 %v234, %v242
      %vm244 = vcmp.eq.f32.partialorder %v234, inf
      %v245 = vsel %vm244, %v234, %v243
      %vm246 = vcmp.eq.f32.partialorder %v234, 0.0
      %v247 = vand.u32 %v234, 2147483648
      %v248 = vsel %vm246, %v247, %v245
      %v249 = vadd.f32 %v217, %v241
      %v250 = vadd.f32 %v218, %v248
      %s251 = scalar_lea.vmem %s144, 48
      %v252 = vld [vmem:[%s251] sm:$0xf]
      %v253 = vld [vmem:[%s251 + $0x4] sm:$0xf]
      %v254 = vunpack.c.l.bf16 %v252
      %v255 = vunpack.c.l.bf16 %v253
      %s256 = scalar_lea.vmem %s144, 56
      %v257 = vld [vmem:[%s256] sm:$0xf]
      %v258 = vld [vmem:[%s256 + $0x4] sm:$0xf]
      %v259 = vunpack.c.l.bf16 %v257
      %v260 = vunpack.c.l.bf16 %v258
      %v261 = vmul.f32 %v254, %v254
      %v262 = vmul.f32 %v255, %v255
      %v263 = vmul.f32 %v259, %v259
      %v264 = vmul.f32 %v260, %v260
      %v265 = vadd.f32 %v261, %v263
      %v266 = vadd.f32 %v262, %v264
      %v267 = vrsqrt.pop %v265
      %v268 = vmul.f32 %v265, %v267
      %vm269 = vcmp.eq.f32.partialorder %v265, inf
      %v270 = vsel %vm269, %v265, %v268
      %vm271 = vcmp.eq.f32.partialorder %v265, 0.0
      %v272 = vand.u32 %v265, 2147483648
      %v273 = vsel %vm271, %v272, %v270
      %v274 = vrsqrt.pop %v266
      %v275 = vmul.f32 %v266, %v274
      %vm276 = vcmp.eq.f32.partialorder %v266, inf
      %v277 = vsel %vm276, %v266, %v275
      %vm278 = vcmp.eq.f32.partialorder %v266, 0.0
      %v279 = vand.u32 %v266, 2147483648
      %v280 = vsel %vm278, %v279, %v277
      %v281 = vadd.f32 %v249, %v273
      %v282 = vadd.f32 %v250, %v280
      %s283 = scalar_lea.vmem %s144, 64
      %v284 = vld [vmem:[%s283] sm:$0xf]
      %v285 = vld [vmem:[%s283 + $0x4] sm:$0xf]
      %v286 = vunpack.c.l.bf16 %v284
      %v287 = vunpack.c.l.bf16 %v285
      %s288 = scalar_lea.vmem %s144, 72
      %v289 = vld [vmem:[%s288] sm:$0xf]
      %v290 = vld [vmem:[%s288 + $0x4] sm:$0xf]
      %v291 = vunpack.c.l.bf16 %v289
      %v292 = vunpack.c.l.bf16 %v290
      %v293 = vmul.f32 %v286, %v286
      %v294 = vmul.f32 %v287, %v287
      %v295 = vmul.f32 %v291, %v291
      %v296 = vmul.f32 %v292, %v292
      %v297 = vadd.f32 %v293, %v295
      %v298 = vadd.f32 %v294, %v296
      %v299 = vrsqrt.pop %v297
      %v300 = vmul.f32 %v297, %v299
      %vm301 = vcmp.eq.f32.partialorder %v297, inf
      %v302 = vsel %vm301, %v297, %v300
      %vm303 = vcmp.eq.f32.partialorder %v297, 0.0
      %v304 = vand.u32 %v297, 2147483648
      %v305 = vsel %vm303, %v304, %v302
      %v306 = vrsqrt.pop %v298
      %v307 = vmul.f32 %v298, %v306
      %vm308 = vcmp.eq.f32.partialorder %v298, inf
      %v309 = vsel %vm308, %v298, %v307
      %vm310 = vcmp.eq.f32.partialorder %v298, 0.0
      %v311 = vand.u32 %v298, 2147483648
      %v312 = vsel %vm310, %v311, %v309
      %v313 = vadd.f32 %v281, %v305
      %v314 = vadd.f32 %v282, %v312
      %s315 = scalar_lea.vmem %s144, 80
      %v316 = vld [vmem:[%s315] sm:$0xf]
      %v317 = vld [vmem:[%s315 + $0x4] sm:$0xf]
      %v318 = vunpack.c.l.bf16 %v316
      %v319 = vunpack.c.l.bf16 %v317
      %s320 = scalar_lea.vmem %s144, 88
      %v321 = vld [vmem:[%s320] sm:$0xf]
      %v322 = vld [vmem:[%s320 + $0x4] sm:$0xf]
      %v323 = vunpack.c.l.bf16 %v321
      %v324 = vunpack.c.l.bf16 %v322
      %v325 = vmul.f32 %v318, %v318
      %v326 = vmul.f32 %v319, %v319
      %v327 = vmul.f32 %v323, %v323
      %v328 = vmul.f32 %v324, %v324
      %v329 = vadd.f32 %v325, %v327
      %v330 = vadd.f32 %v326, %v328
      %v331 = vrsqrt.pop %v329
      %v332 = vmul.f32 %v329, %v331
      %vm333 = vcmp.eq.f32.partialorder %v329, inf
      %v334 = vsel %vm333, %v329, %v332
      %vm335 = vcmp.eq.f32.partialorder %v329, 0.0
      %v336 = vand.u32 %v329, 2147483648
      %v337 = vsel %vm335, %v336, %v334
      %v338 = vrsqrt.pop %v330
      %v339 = vmul.f32 %v330, %v338
      %vm340 = vcmp.eq.f32.partialorder %v330, inf
      %v341 = vsel %vm340, %v330, %v339
      %vm342 = vcmp.eq.f32.partialorder %v330, 0.0
      %v343 = vand.u32 %v330, 2147483648
      %v344 = vsel %vm342, %v343, %v341
      %v345 = vadd.f32 %v313, %v337
      %v346 = vadd.f32 %v314, %v344
      %s347 = scalar_lea.vmem %s144, 96
      %v348 = vld [vmem:[%s347] sm:$0xf]
      %v349 = vld [vmem:[%s347 + $0x4] sm:$0xf]
      %v350 = vunpack.c.l.bf16 %v348
      %v351 = vunpack.c.l.bf16 %v349
      %s352 = scalar_lea.vmem %s144, 104
      %v353 = vld [vmem:[%s352] sm:$0xf]
      %v354 = vld [vmem:[%s352 + $0x4] sm:$0xf]
      %v355 = vunpack.c.l.bf16 %v353
      %v356 = vunpack.c.l.bf16 %v354
      %v357 = vmul.f32 %v350, %v350
      %v358 = vmul.f32 %v351, %v351
      %v359 = vmul.f32 %v355, %v355
      %v360 = vmul.f32 %v356, %v356
      %v361 = vadd.f32 %v357, %v359
      %v362 = vadd.f32 %v358, %v360
      %v363 = vrsqrt.pop %v361
      %v364 = vmul.f32 %v361, %v363
      %vm365 = vcmp.eq.f32.partialorder %v361, inf
      %v366 = vsel %vm365, %v361, %v364
      %vm367 = vcmp.eq.f32.partialorder %v361, 0.0
      %v368 = vand.u32 %v361, 2147483648
      %v369 = vsel %vm367, %v368, %v366
      %v370 = vrsqrt.pop %v362
      %v371 = vmul.f32 %v362, %v370
      %vm372 = vcmp.eq.f32.partialorder %v362, inf
      %v373 = vsel %vm372, %v362, %v371
      %vm374 = vcmp.eq.f32.partialorder %v362, 0.0
      %v375 = vand.u32 %v362, 2147483648
      %v376 = vsel %vm374, %v375, %v373
      %v377 = vadd.f32 %v345, %v369
      %v378 = vadd.f32 %v346, %v376
      %s379 = scalar_lea.vmem %s144, 112
      %v380 = vld [vmem:[%s379] sm:$0xf]
      %v381 = vld [vmem:[%s379 + $0x4] sm:$0xf]
      %v382 = vunpack.c.l.bf16 %v380
      %v383 = vunpack.c.l.bf16 %v381
      %s384 = scalar_lea.vmem %s144, 120
      %v385 = vld [vmem:[%s384] sm:$0xf]
      %v386 = vld [vmem:[%s384 + $0x4] sm:$0xf]
      %v387 = vunpack.c.l.bf16 %v385
      %v388 = vunpack.c.l.bf16 %v386
      %v389 = vmul.f32 %v382, %v382
      %v390 = vmul.f32 %v383, %v383
      %v391 = vmul.f32 %v387, %v387
      %v392 = vmul.f32 %v388, %v388
      %v393 = vadd.f32 %v389, %v391
      %v394 = vadd.f32 %v390, %v392
      %v395 = vrsqrt.pop %v393
      %v396 = vmul.f32 %v393, %v395
      %vm397 = vcmp.eq.f32.partialorder %v393, inf
      %v398 = vsel %vm397, %v393, %v396
      %vm399 = vcmp.eq.f32.partialorder %v393, 0.0
      %v400 = vand.u32 %v393, 2147483648
      %v401 = vsel %vm399, %v400, %v398
      %v402 = vrsqrt.pop %v394
      %v403 = vmul.f32 %v394, %v402
      %vm404 = vcmp.eq.f32.partialorder %v394, inf
      %v405 = vsel %vm404, %v394, %v403
      %vm406 = vcmp.eq.f32.partialorder %v394, 0.0
      %v407 = vand.u32 %v394, 2147483648
      %v408 = vsel %vm406, %v407, %v405
      %v409 = vadd.f32 %v377, %v401
      %v410 = vadd.f32 %v378, %v408
      %411 = vst [vmem:[%s154] sm:$0xff] %v409
      %412 = vst [vmem:[%s154 + $0x8] sm:$0xff] %v410
      %s413 = smul.u32 2, %s17
      %p414 = scmp.lt.s32.totalorder %s16, 1
      %s415 = scalar_select %p414, %s16, 1
      %p416 = scmp.lt.s32.totalorder %s413, 1
      %s417 = scalar_select %p416, %s413, 1
      %s418 = smul.addr %s415, 2
      %s419 = sadd.s32 %s417, %s418
      %s420 = smul.addr %s419, 8
      %s421 = scalar_lea.vmem %s1, %s420
      // Predicated region
      $region25: #{spw_loss.5} parent=23 // pred_check
        %p422 = pneg %p72
      $region26: #{spw_loss.5} parent=23 // pred_check_branch
        %424 = sbr.rel (%p422) target = $region28
      $region27: #{spw_loss.5} parent=23 // pred_region
        %s425 = smul.u32 2, %s17
      $region28: #{spw_loss.5} parent=23 // pred_fallthru
        _
    $region24: #{spw_loss.5} parent=5 // pred_fallthru
      _
    %p426 = scmp.le.s32.totalorder 2, %s7
    // Predicated region
    $region29: #{spw_loss.5} parent=5 // pred_check
      %p427 = pneg %p426
    $region30: #{spw_loss.5} parent=5 // pred_check_branch
      %429 = sbr.rel (%p427) target = $region32
    $region31: #{spw_loss.5} parent=5 // pred_region
      %s430 = ssub.s32 %s7, 2
      // Predicated region
      $region33: #{spw_loss.5} parent=31 // pred_check
        %p431 = pneg %p78
      $region34: #{spw_loss.5} parent=31 // pred_check_branch
        %433 = sbr.rel (%p431) target = $region36
      $region35: #{spw_loss.5} parent=31 // pred_region
        %s434 = smul.u32 2, %s19
        %p435 = scmp.lt.s32.totalorder %s18, 1
        %s436 = scalar_select %p435, %s18, 1
        %p437 = scmp.lt.s32.totalorder %s434, 1
        %s438 = scalar_select %p437, %s434, 1
        %s439 = smul.addr %s436, 2
        %s440 = sadd.s32 %s438, %s439
        %s441 = smul.addr %s440, 8
        %s442 = scalar_lea.vmem %s1, %s441
      $region36: #{spw_loss.5} parent=31 // pred_fallthru
        _
    $region32: #{spw_loss.5} parent=5 // pred_fallthru
      _
  $region6: #{spw_loss.5} parent=0 // loop_footer
    %s11 = sadd.s32 1, %s7
  $region7: #{spw_loss.5} parent=0 // loop_footer_branch
    %6 = sbr.rel target = $region3
  $region8: #{spw_loss.5} parent=0 // loop_exit
    _

// kernel: reverse.14
$region0: #{reverse.14}
  #allocation0 [shape = 's32[1]{0}', space=sflag, size = 0x4, scoped, tag = 'scoped memory for reverse.14']
  %s0 = inlined_call_operand.vmem [shape: f32[2,1,8,3], index: 0, kind: input, shape index: {}]
  %s1 = inlined_call_operand.vmem [shape: f32[2,1,8,3], index: 1, kind: output, shape index: {}]
  %s2 = scalar_lea.vmem %s0, 4
  %v3 = vld [vmem:[%s2] sm:$0x3]
  %4 = vst [vmem:[%s1] sm:$0x3] %v3
  %s5 = scalar_lea.vmem %s0, 2
  %v6 = vld [vmem:[%s5] sm:$0x3]
  %s7 = scalar_lea.vmem %s1, 2
  %8 = vst [vmem:[%s7] sm:$0x3] %v6
  %v9 = vld [vmem:[%s0] sm:$0x3]
  %s10 = scalar_lea.vmem %s1, 4
  %11 = vst [vmem:[%s10] sm:$0x3] %v9

// kernel: reverse.12
$region0: #{reverse.12}
  %s0 = inlined_call_operand.vmem [shape: f32[2,1,16,7], index: 0, kind: input, shape index: {}]
  %s1 = inlined_call_operand.vmem [shape: f32[2,1,16,7], index: 1, kind: output, shape index: {}]
  $region1: #{reverse.12} parent=0
    #allocation0 [shape = 'u8[16384]{0}', space=vmem, size = 0x4000, scoped, tag = 'operand span for operand 0']
    #allocation1 [shape = 'u8[8192]{0}', space=vmem, size = 0x2000, scoped, tag = 'operand span for operand 1']
    %s2 = scalar_lea.vmem [#allocation0], 8
    // Predicated region
    $region2: #{reverse.12} parent=1 // pred_check
      _
    $region3: #{reverse.12} parent=1 // pred_check_branch
      %4 = sbr.rel (0) target = $region5
    $region4: #{reverse.12} parent=1 // pred_region
      // Predicated region
      $region6: #{reverse.12} parent=4 // pred_check
        _
      $region7: #{reverse.12} parent=4 // pred_check_branch
        %6 = sbr.rel (0) target = $region9
      $region8: #{reverse.12} parent=4 // pred_region
        // Predicated region
        $region21: #{reverse.12} parent=8 // pred_check
          _
        $region22: #{reverse.12} parent=8 // pred_check_branch
          %24 = sbr.rel (0) target = $region24
        $region23: #{reverse.12} parent=8 // pred_region
          loop: start=0, step=1, limit=1
          $region25: #{reverse.12} parent=23 // loop_pre_header
            _
          $region26: #{reverse.12} parent=23 // loop_header
            %s26 = sphi 0, %s30
            %p27 = scmp.ge.s32.totalorder %s26, 1
            %s31 = sphi %s0, %s0
            %s32 = sphi %s2, %s2
          $region27: #{reverse.12} parent=23 // loop_header_branch
            %29 = sbr.rel (%p27) target = $region31
          $region28: #{reverse.12} parent=23 // loop_body
            %v33 = vld [vmem:[%s31] sm:$0xff]
            %34 = vst [vmem:[%s32] sm:$0xff] %v33
            %v35 = vld [vmem:[%s31 + $0x8] sm:$0xff]
            %36 = vst [vmem:[%s32 + $0x10] sm:$0xff] %v35
          $region29: #{reverse.12} parent=23 // loop_footer
            %s30 = sadd.s32 1, %s26
          $region30: #{reverse.12} parent=23 // loop_footer_branch
            %25 = sbr.rel target = $region26
          $region31: #{reverse.12} parent=23 // loop_exit
            _
        $region24: #{reverse.12} parent=8 // pred_fallthru
          _
        // Predicated region
        $region32: #{reverse.12} parent=8 // pred_check
          _
        $region33: #{reverse.12} parent=8 // pred_check_branch
          %38 = sbr.rel target = $region35
        $region34: #{reverse.12} parent=8 // pred_region
          _
        $region35: #{reverse.12} parent=8 // pred_fallthru
          _
      $region9: #{reverse.12} parent=4 // pred_fallthru
        _
      // Predicated region
      $region10: #{reverse.12} parent=4 // pred_check
        _
      $region11: #{reverse.12} parent=4 // pred_check_branch
        %8 = sbr.rel target = $region13
      $region12: #{reverse.12} parent=4 // pred_region
        %s10 = ssub.s32 256, 1
        loop: start=0, step=1, limit=1
        $region14: #{reverse.12} parent=12 // loop_pre_header
          _
        $region15: #{reverse.12} parent=12 // loop_header
          %s12 = sphi 0, %s16
          %p13 = scmp.ge.s32.totalorder %s12, 1
          %s17 = sphi %s0, %s0
          %s18 = sphi %s2, %s2
        $region16: #{reverse.12} parent=12 // loop_header_branch
          %15 = sbr.rel (%p13) target = $region20
        $region17: #{reverse.12} parent=12 // loop_body
          %v19 = vld [vmem:[%s17] sm:%s10]
          %20 = vst [vmem:[%s18] sm:%s10] %v19
          %v21 = vld [vmem:[%s17 + $0x8] sm:%s10]
          %22 = vst [vmem:[%s18 + $0x10] sm:%s10] %v21
        $region18: #{reverse.12} parent=12 // loop_footer
          %s16 = sadd.s32 1, %s12
        $region19: #{reverse.12} parent=12 // loop_footer_branch
          %11 = sbr.rel target = $region15
        $region20: #{reverse.12} parent=12 // loop_exit
          _
      $region13: #{reverse.12} parent=4 // pred_fallthru
        _
    $region5: #{reverse.12} parent=1 // pred_fallthru
      _
    %39 = vnop
    %s40 = scalar_lea.vmem [#allocation0], 7
    %v41 = vld [vmem:[%s40] ss:$-1 sm:$0xff]
    %v42 = vrot.slane %v41, 1
    %43 = vst [vmem:[#allocation1] sm:$0xff] %v42
    %s44 = scalar_lea.vmem [#allocation0], 8
    %s45 = scalar_lea.vmem %s44, 7 [#allocation0]
    %v46 = vld [vmem:[%s45] ss:$-1 sm:$0xff]
    %v47 = vrot.slane %v46, 1
    %v48 = vlaneseq
    %v49 = vshrl.u32 %v48, 7
    %vm50 = vcmp.lt.s32.totalorder %v49, 7
    %51 = vst.msk [vmem:[#allocation1] sm:$0xff] %vm50, %v47
    %s52 = scalar_lea.vmem [#allocation1], 8
    %s53 = scalar_lea.vmem [#allocation0], 16
    %s54 = scalar_lea.vmem %s53, 7 [#allocation0]
    %v55 = vld [vmem:[%s54] ss:$-1 sm:$0xff]
    %v56 = vrot.slane %v55, 1
    %57 = vst [vmem:[%s52] sm:$0xff] %v56
    %s58 = scalar_lea.vmem %s53, 8 [#allocation0]
    %s59 = scalar_lea.vmem %s58, 7 [#allocation0]
    %v60 = vld [vmem:[%s59] ss:$-1 sm:$0xff]
    %v61 = vrot.slane %v60, 1
    %v62 = vlaneseq
    %v63 = vshrl.u32 %v62, 7
    %vm64 = vcmp.lt.s32.totalorder %v63, 7
    %65 = vst.msk [vmem:[%s52] sm:$0xff] %vm64, %v61
    // Predicated region
    $region36: #{reverse.12} parent=1 // pred_check
      _
    $region37: #{reverse.12} parent=1 // pred_check_branch
      %67 = sbr.rel (0) target = $region39
    $region38: #{reverse.12} parent=1 // pred_region
      // Predicated region
      $region40: #{reverse.12} parent=38 // pred_check
        _
      $region41: #{reverse.12} parent=38 // pred_check_branch
        %69 = sbr.rel (0) target = $region43
      $region42: #{reverse.12} parent=38 // pred_region
        // Predicated region
        $region55: #{reverse.12} parent=42 // pred_check
          _
        $region56: #{reverse.12} parent=42 // pred_check_branch
          %87 = sbr.rel (0) target = $region58
        $region57: #{reverse.12} parent=42 // pred_region
          loop: start=0, step=1, limit=1
          $region59: #{reverse.12} parent=57 // loop_pre_header
            _
          $region60: #{reverse.12} parent=57 // loop_header
            %s89 = sphi 0, %s93
            %p90 = scmp.ge.s32.totalorder %s89, 1
            %s94 = sphi [#allocation1], [#allocation1]
            %s95 = sphi %s1, %s1
          $region61: #{reverse.12} parent=57 // loop_header_branch
            %92 = sbr.rel (%p90) target = $region65
          $region62: #{reverse.12} parent=57 // loop_body
            %v96 = vld [vmem:[%s94] sm:$0xff]
            %97 = vst [vmem:[%s95] sm:$0xff] %v96
            %v98 = vld [vmem:[%s94 + $0x8] sm:$0xff]
            %99 = vst [vmem:[%s95 + $0x8] sm:$0xff] %v98
          $region63: #{reverse.12} parent=57 // loop_footer
            %s93 = sadd.s32 1, %s89
          $region64: #{reverse.12} parent=57 // loop_footer_branch
            %88 = sbr.rel target = $region60
          $region65: #{reverse.12} parent=57 // loop_exit
            _
        $region58: #{reverse.12} parent=42 // pred_fallthru
          _
        // Predicated region
        $region66: #{reverse.12} parent=42 // pred_check
          _
        $region67: #{reverse.12} parent=42 // pred_check_branch
          %101 = sbr.rel target = $region69
        $region68: #{reverse.12} parent=42 // pred_region
          _
        $region69: #{reverse.12} parent=42 // pred_fallthru
          _
      $region43: #{reverse.12} parent=38 // pred_fallthru
        _
      // Predicated region
      $region44: #{reverse.12} parent=38 // pred_check
        _
      $region45: #{reverse.12} parent=38 // pred_check_branch
        %71 = sbr.rel target = $region47
      $region46: #{reverse.12} parent=38 // pred_region
        %s73 = ssub.s32 256, 1
        loop: start=0, step=1, limit=1
        $region48: #{reverse.12} parent=46 // loop_pre_header
          _
        $region49: #{reverse.12} parent=46 // loop_header
          %s75 = sphi 0, %s79
          %p76 = scmp.ge.s32.totalorder %s75, 1
          %s80 = sphi [#allocation1], [#allocation1]
          %s81 = sphi %s1, %s1
        $region50: #{reverse.12} parent=46 // loop_header_branch
          %78 = sbr.rel (%p76) target = $region54
        $region51: #{reverse.12} parent=46 // loop_body
          %v82 = vld [vmem:[%s80] sm:%s73]
          %83 = vst [vmem:[%s81] sm:%s73] %v82
          %v84 = vld [vmem:[%s80 + $0x8] sm:%s73]
          %85 = vst [vmem:[%s81 + $0x8] sm:%s73] %v84
        $region52: #{reverse.12} parent=46 // loop_footer
          %s79 = sadd.s32 1, %s75
        $region53: #{reverse.12} parent=46 // loop_footer_branch
          %74 = sbr.rel target = $region49
        $region54: #{reverse.12} parent=46 // loop_exit
          _
      $region47: #{reverse.12} parent=38 // pred_fallthru
        _
    $region39: #{reverse.12} parent=1 // pred_fallthru
      _
    %102 = vnop

// kernel: spw_loss.9
$region0: #{spw_loss.9}
  #allocation0 [shape = 'u32[]', space=smem, size = 0x4, offset = 0x4, fixed_abs, tag = 'smem constant byte address 0x4 - core index']
  #allocation1 [shape = 'u32[144,128]{1,0:T(1,128)}', space=vmem, size = 0x12000, scoped, tag = 'internal scratch']
  #allocation2 [shape = 'f32[16,128]{1,0:T(8,128)}', space=vmem, size = 0x2000, scoped, tag = 'scratch operand']
  %s0 = inlined_call_operand.vmem [shape: f32[4], index: 0, kind: input, shape index: {}]
  %s1 = inlined_call_operand.vmem [shape: bf16[2,32,128], index: 1, kind: input, shape index: {}]
  %s2 = inlined_call_operand.vmem [shape: f32[2,32,128], index: 2, kind: input, shape index: {}]
  %s3 = inlined_call_operand.vmem [shape: f32[2,32,128], index: 3, kind: input, shape index: {}]
  %s4 = inlined_call_operand.vmem [shape: f32[2,2,1,128], index: 4, kind: output, shape index: {}]
  %s5 = sld [smem:[#allocation0]]
  $region61: #{spw_loss.9} parent=0
    _
  %s7 = ssub.s32 1, %s5
  %s8 = scalar_select 0, %s7, %s5
  $region1: #{spw_loss.9} parent=0
    #allocation3 [shape = 'u8[512]{0}', space=smem, size = 0x200, scoped, tag = 'input window, operand 0, single buffered']
    #allocation4 [shape = 's32[2]{0}', space=sflag, size = 0x8, scoped, tag = 'scoped memory for spw_loss.9']
    %9 = vsyncpa [#allocation4], 0
    loop: start=0, step=1, limit=6
    $region2: #{spw_loss.9} parent=1 // loop_pre_header
      _
    $region3: #{spw_loss.9} parent=1 // loop_header
      %s11 = sphi 0, %s15
      %p12 = scmp.ge.s32.totalorder %s11, 6
      %s18 = sphi 0, %s37
      %s19 = sphi 0, %s33
      %s20 = sphi 0, %s29
      %s21 = sphi 0, %s18
      %s22 = sphi 0, %s19
      %s23 = sphi 0, %s20
      %s24 = sphi 0, %s21
      %s25 = sphi 0, %s22
      %s26 = sphi 0, %s23
      %s38 = sphi 0, %s38
      %s40 = sphi 0, %s38
      %s41 = sphi 0, %s40
      %s55 = sphi 0, %s41
      %s65 = sphi 0, %s67
      %s68 = sphi 0, %s65
      %s69 = sphi 0, %s68
      %s85 = sphi 0, %s69
      %s95 = sphi 0, %s97
      %s98 = sphi 0, %s95
      %s99 = sphi 0, %s98
      %s115 = sphi 0, %s99
      %s125 = sphi 0, %s127
      %s128 = sphi 0, %s125
      %s129 = sphi 0, %s128
      %s145 = sphi 0, %s129
      %s153 = sphi 0, %s155
      %s156 = sphi 0, %s153
      %s157 = sphi 0, %s156
      %s173 = sphi 0, %s157
    $region4: #{spw_loss.9} parent=1 // loop_header_branch
      %14 = sbr.rel (%p12) target = $region8
    $region5: #{spw_loss.9} parent=1 // loop_body
      %s16 = ssub.s32 %s11, 1
      %s17 = ssub.s32 %s11, 2
      %s27 = sadd.s32 1, %s20
      %p28 = scmp.ge.s32.totalorder %s27, 1
      %s29 = scalar_select %p28, 0, %s27
      %s30 = sadd.s32 1, %s19
      %s31 = scalar_select %p28, %s30, %s19
      %p32 = scmp.ge.s32.totalorder %s31, 2
      %s33 = scalar_select %p32, 0, %s31
      %s34 = sadd.s32 1, %s18
      %s35 = scalar_select %p32, %s34, %s18
      %p36 = scmp.ge.s32.totalorder %s35, 2
      %s37 = scalar_select %p36, 0, %s35
      %s39 = sadd.s32 %s38, 1
      %p42 = scmp.eq.s32.totalorder %s11, 3
      %p43 = scmp.ne.s32.totalorder %s38, %s40
      %p44 = scmp.eq.s32.totalorder %s11, 0
      %p45 = por %p43, %p44
      %p46 = scmp.ne.s32.totalorder %s38, %s40
      %p47 = scmp.eq.s32.totalorder %s16, 3
      %p48 = por %p46, %p47
      %p49 = scmp.ne.s32.totalorder %s40, %s41
      %p50 = scmp.eq.s32.totalorder %s16, 0
      %p51 = por %p49, %p50
      %p52 = scmp.ne.s32.totalorder %s40, %s41
      %p53 = scmp.eq.s32.totalorder %s17, 3
      %p54 = por %p52, %p53
      %p56 = scmp.ne.s32.totalorder %s41, %s55
      %p57 = scmp.eq.s32.totalorder %s17, 0
      %p58 = por %p56, %p57
      %s59 = sadd.s32 %s19, %s20
      %s60 = sadd.s32 %s33, %s29
      %s61 = ssub.s32 %s18, %s37
      %s62 = ssub.s32 %s59, %s60
      %s63 = sor.u32 %s61, %s62
      %p64 = scmp.eq.s32.totalorder %s63, 0
      %s66 = sadd.s32 %s65, 1
      %s67 = scalar_select %p64, %s65, %s66
      %p70 = pneg %p64
      %p71 = scmp.eq.s32.totalorder %s11, 3
      %p72 = por %p70, %p71
      %p73 = scmp.ne.s32.totalorder %s65, %s68
      %p74 = scmp.eq.s32.totalorder %s11, 0
      %p75 = por %p73, %p74
      %p76 = scmp.ne.s32.totalorder %s65, %s68
      %p77 = scmp.eq.s32.totalorder %s16, 3
      %p78 = por %p76, %p77
      %p79 = scmp.ne.s32.totalorder %s68, %s69
      %p80 = scmp.eq.s32.totalorder %s16, 0
      %p81 = por %p79, %p80
      %p82 = scmp.ne.s32.totalorder %s68, %s69
      %p83 = scmp.eq.s32.totalorder %s17, 3
      %p84 = por %p82, %p83
      %p86 = scmp.ne.s32.totalorder %s69, %s85
      %p87 = scmp.eq.s32.totalorder %s17, 0
      %p88 = por %p86, %p87
      %s89 = sadd.s32 %s19, %s20
      %s90 = sadd.s32 %s33, %s29
      %s91 = ssub.s32 %s18, %s37
      %s92 = ssub.s32 %s89, %s90
      %s93 = sor.u32 %s91, %s92
      %p94 = scmp.eq.s32.totalorder %s93, 0
      %s96 = sadd.s32 %s95, 1
      %s97 = scalar_select %p94, %s95, %s96
      %p100 = pneg %p94
      %p101 = scmp.eq.s32.totalorder %s11, 3
      %p102 = por %p100, %p101
      %p103 = scmp.ne.s32.totalorder %s95, %s98
      %p104 = scmp.eq.s32.totalorder %s11, 0
      %p105 = por %p103, %p104
      %p106 = scmp.ne.s32.totalorder %s95, %s98
      %p107 = scmp.eq.s32.totalorder %s16, 3
      %p108 = por %p106, %p107
      %p109 = scmp.ne.s32.totalorder %s98, %s99
      %p110 = scmp.eq.s32.totalorder %s16, 0
      %p111 = por %p109, %p110
      %p112 = scmp.ne.s32.totalorder %s98, %s99
      %p113 = scmp.eq.s32.totalorder %s17, 3
      %p114 = por %p112, %p113
      %p116 = scmp.ne.s32.totalorder %s99, %s115
      %p117 = scmp.eq.s32.totalorder %s17, 0
      %p118 = por %p116, %p117
      %s119 = sadd.s32 %s19, %s20
      %s120 = sadd.s32 %s33, %s29
      %s121 = ssub.s32 %s18, %s37
      %s122 = ssub.s32 %s119, %s120
      %s123 = sor.u32 %s121, %s122
      %p124 = scmp.eq.s32.totalorder %s123, 0
      %s126 = sadd.s32 %s125, 1
      %s127 = scalar_select %p124, %s125, %s126
      %p130 = pneg %p124
      %p131 = scmp.eq.s32.totalorder %s11, 3
      %p132 = por %p130, %p131
      %p133 = scmp.ne.s32.totalorder %s125, %s128
      %p134 = scmp.eq.s32.totalorder %s11, 0
      %p135 = por %p133, %p134
      %p136 = scmp.ne.s32.totalorder %s125, %s128
      %p137 = scmp.eq.s32.totalorder %s16, 3
      %p138 = por %p136, %p137
      %p139 = scmp.ne.s32.totalorder %s128, %s129
      %p140 = scmp.eq.s32.totalorder %s16, 0
      %p141 = por %p139, %p140
      %p142 = scmp.ne.s32.totalorder %s128, %s129
      %p143 = scmp.eq.s32.totalorder %s17, 3
      %p144 = por %p142, %p143
      %p146 = scmp.ne.s32.totalorder %s129, %s145
      %p147 = scmp.eq.s32.totalorder %s17, 0
      %p148 = por %p146, %p147
      %s149 = ssub.s32 %s18, %s37
      %s150 = ssub.s32 %s19, %s33
      %s151 = sor.u32 %s149, %s150
      %p152 = scmp.eq.s32.totalorder %s151, 0
      %s154 = sadd.s32 %s153, 1
      %s155 = scalar_select %p152, %s153, %s154
      %p158 = pneg %p152
      %p159 = scmp.eq.s32.totalorder %s11, 3
      %p160 = por %p158, %p159
      %p161 = scmp.ne.s32.totalorder %s153, %s156
      %p162 = scmp.eq.s32.totalorder %s11, 0
      %p163 = por %p161, %p162
      %p164 = scmp.ne.s32.totalorder %s153, %s156
      %p165 = scmp.eq.s32.totalorder %s16, 3
      %p166 = por %p164, %p165
      %p167 = scmp.ne.s32.totalorder %s156, %s157
      %p168 = scmp.eq.s32.totalorder %s16, 0
      %p169 = por %p167, %p168
      %p170 = scmp.ne.s32.totalorder %s156, %s157
      %p171 = scmp.eq.s32.totalorder %s17, 3
      %p172 = por %p170, %p171
      %p174 = scmp.ne.s32.totalorder %s157, %s173
      %p175 = scmp.eq.s32.totalorder %s17, 0
      %p176 = por %p174, %p175
      %p177 = scmp.le.s32.totalorder 1, %s11
      %p178 = scmp.lt.s32.totalorder %s11, 5
      %p179 = pnand %p177, %p178
      %p180 = pneg %p179
      // Predicated region
      $region9: #{spw_loss.9} parent=5 // pred_check
        _
      $region10: #{spw_loss.9} parent=5 // pred_check_branch
        %182 = sbr.rel (%p179) target = $region12
      $region11: #{spw_loss.9} parent=5 // pred_region
        %s183 = ssub.s32 %s11, 1
        // Predicated region
        $region13: #{spw_loss.9} parent=11 // pred_check
          %p184 = pneg %p51
        $region14: #{spw_loss.9} parent=11 // pred_check_branch
          %186 = sbr.rel (%p184) target = $region16
        $region15: #{spw_loss.9} parent=11 // pred_region
          %s188 = ssub.s32 16, 16
          %189 = vsyncadd [#allocation4], %s188
          %s191 = sshll.u32 %s0, 4
          %s192 = int_to_ptr.vmem [resolvable:$true] %s191
          %194 = dma.vmem_to_smem %s192, 16, [#allocation3], [#allocation4]
        $region16: #{spw_loss.9} parent=11 // pred_fallthru
          _
      $region12: #{spw_loss.9} parent=5 // pred_fallthru
        _
      %p195 = scmp.lt.s32.totalorder %s11, 4
      // Predicated region
      $region17: #{spw_loss.9} parent=5 // pred_check
        %p196 = pneg %p195
      $region18: #{spw_loss.9} parent=5 // pred_check_branch
        %198 = sbr.rel (%p196) target = $region20
      $region19: #{spw_loss.9} parent=5 // pred_region
        // Predicated region
        $region21: #{spw_loss.9} parent=19 // pred_check
          %p199 = pneg %p75
        $region22: #{spw_loss.9} parent=19 // pred_check_branch
          %201 = sbr.rel (%p199) target = $region24
        $region23: #{spw_loss.9} parent=19 // pred_region
          %s202 = sadd.s32 %s19, %s20
          %s203 = smul.u32 2, %s202
          %p204 = scmp.lt.s32.totalorder %s18, 1
          %s205 = scalar_select %p204, %s18, 1
          %p206 = scmp.lt.s32.totalorder %s203, 3
          %s207 = scalar_select %p206, %s203, 3
          %s208 = smul.addr %s205, 4
          %s209 = sadd.s32 %s207, %s208
          %s210 = smul.addr %s209, 4
          %s211 = scalar_lea.vmem %s1, %s210
          %s212 = sadd.s32 %s19, %s20
          %s213 = smul.u32 2, %s212
        $region24: #{spw_loss.9} parent=19 // pred_fallthru
          _
        // Predicated region
        $region25: #{spw_loss.9} parent=19 // pred_check
          %p214 = pneg %p105
        $region26: #{spw_loss.9} parent=19 // pred_check_branch
          %216 = sbr.rel (%p214) target = $region28
        $region27: #{spw_loss.9} parent=19 // pred_region
          %s217 = sadd.s32 %s19, %s20
          %s218 = smul.u32 2, %s217
          %p219 = scmp.lt.s32.totalorder %s18, 1
          %s220 = scalar_select %p219, %s18, 1
          %p221 = scmp.lt.s32.totalorder %s218, 3
          %s222 = scalar_select %p221, %s218, 3
          %s223 = smul.addr %s220, 4
          %s224 = sadd.s32 %s222, %s223
          %s225 = smul.addr %s224, 8
          %s226 = scalar_lea.vmem %s2, %s225
          %s227 = sadd.s32 %s19, %s20
          %s228 = smul.u32 2, %s227
        $region28: #{spw_loss.9} parent=19 // pred_fallthru
          _
        // Predicated region
        $region29: #{spw_loss.9} parent=19 // pred_check
          %p229 = pneg %p135
        $region30: #{spw_loss.9} parent=19 // pred_check_branch
          %231 = sbr.rel (%p229) target = $region32
        $region31: #{spw_loss.9} parent=19 // pred_region
          %s232 = sadd.s32 %s19, %s20
          %s233 = smul.u32 2, %s232
          %p234 = scmp.lt.s32.totalorder %s18, 1
          %s235 = scalar_select %p234, %s18, 1
          %p236 = scmp.lt.s32.totalorder %s233, 3
          %s237 = scalar_select %p236, %s233, 3
          %s238 = smul.addr %s235, 4
          %s239 = sadd.s32 %s237, %s238
          %s240 = smul.addr %s239, 8
          %s241 = scalar_lea.vmem %s3, %s240
          %s242 = sadd.s32 %s19, %s20
          %s243 = smul.u32 2, %s242
        $region32: #{spw_loss.9} parent=19 // pred_fallthru
          _
      $region20: #{spw_loss.9} parent=5 // pred_fallthru
        _
      %p244 = scmp.le.s32.totalorder 1, %s11
      %p245 = scmp.lt.s32.totalorder %s11, 5
      %p246 = pnand %p244, %p245
      %p247 = pneg %p246
      // Predicated region
      $region33: #{spw_loss.9} parent=5 // pred_check
        _
      $region34: #{spw_loss.9} parent=5 // pred_check_branch
        %249 = sbr.rel (%p246) target = $region36
      $region35: #{spw_loss.9} parent=5 // pred_region
        %s250 = ssub.s32 %s11, 1
        // Predicated region
        $region37: #{spw_loss.9} parent=35 // pred_check
          %p251 = pneg %p51
        $region38: #{spw_loss.9} parent=35 // pred_check_branch
          %253 = sbr.rel (%p251) target = $region40
        $region39: #{spw_loss.9} parent=35 // pred_region
          %254 = dma.done [#allocation4], 16
        $region40: #{spw_loss.9} parent=35 // pred_fallthru
          _
        %255 = sfence
        %p256 = pneg %p51
        %p257 = pneg %p48
        %s258 = sadd.s32 %s22, %s23
        %s259 = smul.u32 2, %s258
        %p260 = scmp.lt.s32.totalorder %s21, 1
        %s261 = scalar_select %p260, %s21, 1
        %p262 = scmp.lt.s32.totalorder %s259, 3
        %s263 = scalar_select %p262, %s259, 3
        %s264 = smul.addr %s261, 4
        %s265 = sadd.s32 %s263, %s264
        %s266 = smul.addr %s265, 4
        %s267 = scalar_lea.vmem %s1, %s266
        %p268 = pneg %p81
        %p269 = pneg %p78
        %s270 = sadd.s32 %s22, %s23
        %s271 = smul.u32 2, %s270
        %p272 = scmp.lt.s32.totalorder %s21, 1
        %s273 = scalar_select %p272, %s21, 1
        %p274 = scmp.lt.s32.totalorder %s271, 3
        %s275 = scalar_select %p274, %s271, 3
        %s276 = smul.addr %s273, 4
        %s277 = sadd.s32 %s275, %s276
        %s278 = smul.addr %s277, 8
        %s279 = scalar_lea.vmem %s2, %s278
        %p280 = pneg %p111
        %p281 = pneg %p108
        %s282 = sadd.s32 %s22, %s23
        %s283 = smul.u32 2, %s282
        %p284 = scmp.lt.s32.totalorder %s21, 1
        %s285 = scalar_select %p284, %s21, 1
        %p286 = scmp.lt.s32.totalorder %s283, 3
        %s287 = scalar_select %p286, %s283, 3
        %s288 = smul.addr %s285, 4
        %s289 = sadd.s32 %s287, %s288
        %s290 = smul.addr %s289, 8
        %s291 = scalar_lea.vmem %s3, %s290
        %p292 = pneg %p141
        %p293 = pneg %p138
        %p294 = pneg %p169
        %p295 = pneg %p166
        %p296 = scmp.lt.s32.totalorder %s21, 1
        %s297 = scalar_select %p296, %s21, 1
        %p298 = scmp.lt.s32.totalorder %s22, 1
        %s299 = scalar_select %p298, %s22, 1
        %s300 = smul.addr %s297, 2
        %s301 = sadd.s32 %s299, %s300
        %s302 = scalar_lea.vmem %s4, %s301
        %s303 = sadd.s32 %s22, %s23
        %s304 = smul.u32 2, %s303
        %p305 = scmp.lt.s32.totalorder %s21, 1
        %s306 = scalar_select %p305, %s21, 1
        %p307 = scmp.lt.s32.totalorder %s304, 3
        %s308 = scalar_select %p307, %s304, 3
        %s309 = smul.addr %s306, 4
        %s310 = sadd.s32 %s308, %s309
        %s311 = smul.addr %s310, 4
        %s312 = scalar_lea.vmem %s1, %s311
        %s313 = sadd.s32 %s22, %s23
        %s314 = smul.u32 2, %s313
        %s315 = sadd.s32 %s22, %s23
        %s316 = smul.u32 2, %s315
        %p317 = scmp.lt.s32.totalorder %s21, 1
        %s318 = scalar_select %p317, %s21, 1
        %p319 = scmp.lt.s32.totalorder %s316, 3
        %s320 = scalar_select %p319, %s316, 3
        %s321 = smul.addr %s318, 4
        %s322 = sadd.s32 %s320, %s321
        %s323 = smul.addr %s322, 8
        %s324 = scalar_lea.vmem %s2, %s323
        %s325 = sadd.s32 %s22, %s23
        %s326 = smul.u32 2, %s325
        %s327 = sadd.s32 %s22, %s23
        %s328 = smul.u32 2, %s327
        %p329 = scmp.lt.s32.totalorder %s21, 1
        %s330 = scalar_select %p329, %s21, 1
        %p331 = scmp.lt.s32.totalorder %s328, 3
        %s332 = scalar_select %p331, %s328, 3
        %s333 = smul.addr %s330, 4
        %s334 = sadd.s32 %s332, %s333
        %s335 = smul.addr %s334, 8
        %s336 = scalar_lea.vmem %s3, %s335
        %s337 = sadd.s32 %s22, %s23
        %s338 = smul.u32 2, %s337
        %p339 = scmp.lt.s32.totalorder %s21, 1
        %s340 = scalar_select %p339, %s21, 1
        %p341 = scmp.lt.s32.totalorder %s22, 1
        %s342 = scalar_select %p341, %s22, 1
        %s343 = smul.addr %s340, 2
        %s344 = sadd.s32 %s342, %s343
        %s345 = scalar_lea.vmem %s4, %s344
        %p346 = scmp.eq.s32.totalorder %s23, 0
        // Predicated region
        $region41: #{spw_loss.9} parent=35 // pred_check
          %p347 = pneg %p346
        $region42: #{spw_loss.9} parent=35 // pred_check_branch
          %349 = sbr.rel (%p347) target = $region44
        $region43: #{spw_loss.9} parent=35 // pred_region
          %350 = vst [vmem:[#allocation2] sm:$0xff] 0.0
          %351 = vst [vmem:[#allocation2 + $0x8] sm:$0xff] 0.0
        $region44: #{spw_loss.9} parent=35 // pred_fallthru
          _
        %v352 = vld [vmem:[%s312] sm:$0xf]
        %v353 = vld [vmem:[%s312 + $0x4] sm:$0xf]
        %v354 = vunpack.c.l.bf16 %v352
        %v355 = vunpack.c.l.bf16 %v353
        %v356 = vmul.f32 %v354, 10.0
        %v357 = vmul.f32 %v355, 10.0
        %v358 = vld [vmem:[%s324] sm:$0xff]
        %v359 = vld [vmem:[%s324 + $0x8] sm:$0xff]
        %v360 = vld [vmem:[%s336] sm:$0xff]
        %v361 = vld [vmem:[%s336 + $0x8] sm:$0xff]
        %s362 = smul.u32 %s21, 2
        %s363 = sld [smem:[#allocation3 + %s362]]
        %s364 = sadd.s32 %s362, 1
        %s365 = sld [smem:[#allocation3 + %s364]]
        %v366 = vadd.f32 %v360, 1e-07
        %v367 = vadd.f32 %v361, 1e-07
        %v368 = vlog2.pop %v366
        %v369 = vmul.f32 %v368, 0.6931472
        %v370 = vlog2.pop %v367
        %v371 = vmul.f32 %v370, 0.6931472
        %v372 = vsub.f32 1.0, %v360
        %v373 = vsub.f32 1.0, %v361
        %v374 = vadd.f32 %v372, 1e-07
        %v375 = vadd.f32 %v373, 1e-07
        %v376 = vlog2.pop %v374
        %v377 = vmul.f32 %v376, 0.6931472
        %v378 = vlog2.pop %v375
        %v379 = vmul.f32 %v378, 0.6931472
        %v380 = vld [vmem:[#allocation2] sm:$0xff]
        %v381 = vld [vmem:[#allocation2 + $0x8] sm:$0xff]
        %vm382 = vcmp.gt.f32.partialorder %v358, 0.5
        %vm383 = vcmp.gt.f32.partialorder %v359, 0.5
        %v384 = vstv %s365
        %v385 = vadd.f32 %v356, %v384
        %v386 = vadd.f32 %v357, %v384
        %v387 = vmul.f32 %v385, %v369
        %v388 = vmul.f32 %v386, %v371
        %v389 = vstv %s363
        %v390 = vadd.f32 %v356, %v389
        %v391 = vadd.f32 %v357, %v389
        %v392 = vmul.f32 %v390, %v377
        %v393 = vmul.f32 %v391, %v379
        %v394 = vsel %vm382, %v387, %v392
        %v395 = vsel %vm383, %v388, %v393
        %v396 = vadd.f32 %v380, %v394
        %v397 = vadd.f32 %v381, %v395
        %398 = vst [vmem:[#allocation2] sm:$0xff] %v396
        %399 = vst [vmem:[#allocation2 + $0x8] sm:$0xff] %v397
        // Predicated region
        $region45: #{spw_loss.9} parent=35 // pred_check
          %p400 = pneg %p346
        $region46: #{spw_loss.9} parent=35 // pred_check_branch
          %402 = sbr.rel (%p400) target = $region48
        $region47: #{spw_loss.9} parent=35 // pred_region
          %v403 = vld [vmem:[#allocation2] sm:$0xff]
          %v404 = vld [vmem:[#allocation2 + $0x8] sm:$0xff]
          %v405 = vadd.f32 %v403, %v404
          %v406 = vrot.slane %v405, 4
          %v407 = vadd.f32 %v405, %v406
          %v408 = vrot.slane %v407, 2
          %v409 = vadd.f32 %v407, %v408
          %v410 = vrot.slane %v409, 1
          %v411 = vadd.f32 %v409, %v410
          %412 = vst [vmem:[%s345] sm:$0x1] %v411
        $region48: #{spw_loss.9} parent=35 // pred_fallthru
          _
        %p413 = scmp.lt.s32.totalorder %s21, 1
        %s414 = scalar_select %p413, %s21, 1
        %p415 = scmp.lt.s32.totalorder %s22, 1
        %s416 = scalar_select %p415, %s22, 1
        %s417 = smul.addr %s414, 2
        %s418 = sadd.s32 %s416, %s417
        %s419 = scalar_lea.vmem %s4, %s418
        // Predicated region
        $region49: #{spw_loss.9} parent=35 // pred_check
          %p420 = pneg %p166
        $region50: #{spw_loss.9} parent=35 // pred_check_branch
          %422 = sbr.rel (%p420) target = $region52
        $region51: #{spw_loss.9} parent=35 // pred_region
          _
        $region52: #{spw_loss.9} parent=35 // pred_fallthru
          _
      $region36: #{spw_loss.9} parent=5 // pred_fallthru
        _
      %p423 = scmp.le.s32.totalorder 2, %s11
      // Predicated region
      $region53: #{spw_loss.9} parent=5 // pred_check
        %p424 = pneg %p423
      $region54: #{spw_loss.9} parent=5 // pred_check_branch
        %426 = sbr.rel (%p424) target = $region56
      $region55: #{spw_loss.9} parent=5 // pred_region
        %s427 = ssub.s32 %s11, 2
        // Predicated region
        $region57: #{spw_loss.9} parent=55 // pred_check
          %p428 = pneg %p172
        $region58: #{spw_loss.9} parent=55 // pred_check_branch
          %430 = sbr.rel (%p428) target = $region60
        $region59: #{spw_loss.9} parent=55 // pred_region
          %p431 = scmp.lt.s32.totalorder %s24, 1
          %s432 = scalar_select %p431, %s24, 1
          %p433 = scmp.lt.s32.totalorder %s25, 1
          %s434 = scalar_select %p433, %s25, 1
          %s435 = smul.addr %s432, 2
          %s436 = sadd.s32 %s434, %s435
          %s437 = scalar_lea.vmem %s4, %s436
        $region60: #{spw_loss.9} parent=55 // pred_fallthru
          _
      $region56: #{spw_loss.9} parent=5 // pred_fallthru
        _
    $region6: #{spw_loss.9} parent=1 // loop_footer
      %s15 = sadd.s32 1, %s11
    $region7: #{spw_loss.9} parent=1 // loop_footer_branch
      %10 = sbr.rel target = $region3
    $region8: #{spw_loss.9} parent=1 // loop_exit
      _
    %438 = vsyncpa [#allocation4], 1
    %s439 = scalar_lea.sflag [#allocation4], 1
    %440 = vsyncpa %s439, 1

</llo_original>
